<compile_context>
chip_gen: v7x
topology: tpu7x:2x2x1
jax: 0.10.0
libtpu: 0.0.40
codegen_flags: <defaults>
</compile_context>

<pallas_src>
import jax
import jax.numpy as jnp
from jax import lax
from jax.experimental import pallas as pl
from jax.experimental.pallas import tpu as pltpu

PAD_IDX = 0  # vocab.word2index['<pad>']


# ----------------------------------------------------------------------------- kernel

def bilstm_kernel(embed_ref, wih_ref, whh_f_ref, whh_b_ref, b_f_ref, b_b_ref,
                  packed_ref, xproj_sc):
    # embed_ref : (T, B, E)
    # wih_ref   : (E, 8H)   [ W_ih_f | W_ih_b ], gate-blocked columns i,f,g,o
    # whh_*_ref : (H, 4H)
    # b_*_ref   : (1, 4H)   (b_ih + b_hh)
    # packed_ref: (T, B, 4H) output
    # xproj_sc  : (T, B, 8H) VMEM scratch holding the hoisted input projection
    T, B, E = embed_ref.shape
    H4 = whh_f_ref.shape[1]          # 4*H  (== 128 lanes for H = 32)
    H = H4 // 4

    # ---- input projection for BOTH directions, hoisted out of the recurrence ----
    # one lane-dense (T*B, E) @ (E, 8H) MXU matmul, parked in VMEM scratch.
    x2d = embed_ref[...].reshape(T * B, E)
    xproj_sc[...] = jnp.dot(
        x2d, wih_ref[...], preferred_element_type=jnp.float32
    ).reshape(T, B, 2 * H4)

    whh_f = whh_f_ref[...]
    whh_b = whh_b_ref[...]
    b_f = b_f_ref[...]
    b_b = b_b_ref[...]

    def cell(x_gates, h, c, whh, b):
        # single fused (B, H) @ (H, 4H) recurrent matmul; gate order i, f, g, o
        gates = x_gates + jnp.dot(h, whh, preferred_element_type=jnp.float32) + b
        i = jax.nn.sigmoid(gates[:, 0 * H:1 * H])
        f = jax.nn.sigmoid(gates[:, 1 * H:2 * H])
        g = jnp.tanh(gates[:, 2 * H:3 * H])
        o = jax.nn.sigmoid(gates[:, 3 * H:4 * H])
        c_new = f * c + i * g
        h_new = o * jnp.tanh(c_new)
        return h_new, c_new

    def step(t, carry):
        hf, cf, hb, cb = carry
        xg_f = xproj_sc[t]             # (B, 8H): precomputed gates for fwd time t
        xg_b = xproj_sc[T - 1 - t]     # (B, 8H): precomputed gates for bwd time T-1-t
        hf, cf = cell(xg_f[:, :H4], hf, cf, whh_f, b_f)
        hb, cb = cell(xg_b[:, H4:], hb, cb, whh_b, b_b)
        # one lane-dense 4H (=128) store per step; backward is stored un-reversed
        # (row t holds backward time T-1-t) and flipped in cheap JAX glue afterwards.
        packed_ref[t] = jnp.concatenate([hf, cf, hb, cb], axis=-1)
        return hf, cf, hb, cb

    zeros = jnp.zeros((B, H), jnp.float32)
    lax.fori_loop(0, T, step, (zeros, zeros, zeros, zeros), unroll=True)


# ----------------------------------------------------------------------------- wrappers

def bilstm_encode(embed, wih_cat, whh_f, whh_b, b_f, b_b):
    T, B, E = embed.shape
    H4 = whh_f.shape[1]
    # Gridless call: every operand is a whole-array VMEM block (total working set
    # well under the scoped VMEM limit at these shapes).
    return pl.pallas_call(
        bilstm_kernel,
        out_shape=jax.ShapeDtypeStruct((T, B, H4), jnp.float32),
        scratch_shapes=[pltpu.VMEM((T, B, 2 * H4), jnp.float32)],
    )(embed, wih_cat, whh_f, whh_b, b_f, b_b)


def encoder_forward(source, emb_table, params):
    """Full Encoder.forward. Returns dict with stacked hs_f/cs_f/hs_b/cs_b, hs, mask."""
    # TODO(synk): embedding gather, the pad mask, and the final add/transpose/flip are
    # plain-JAX glue (tiny elementwise / layout work, per perf review recommendation).
    embed = jnp.take(emb_table, source, axis=0).astype(jnp.float32)   # (T, B, E)
    packed = bilstm_encode(embed, params["wih_cat"], params["whh_f"],
                           params["whh_b"], params["b_f"], params["b_b"])
    H = params["whh_f"].shape[0]
    hs_f = packed[:, :, 0 * H:1 * H]
    cs_f = packed[:, :, 1 * H:2 * H]
    hs_b = packed[::-1, :, 2 * H:3 * H]        # un-reverse the backward direction
    cs_b = packed[::-1, :, 3 * H:4 * H]
    hs = jnp.transpose(hs_f + hs_b, (1, 0, 2))                        # (B, T, H)
    mask = (source == PAD_IDX).T                                      # (B, T)
    return {"hs_f": hs_f, "cs_f": cs_f, "hs_b": hs_b, "cs_b": cs_b, "hs": hs, "mask": mask}


# ----------------------------------------------------------------------------- reference

def _ref_lstm_scan(embed_seq, wih, whh, b):
    T, B, _ = embed_seq.shape
    H = whh.shape[0]
    h = jnp.zeros((B, H), jnp.float32)
    c = jnp.zeros((B, H), jnp.float32)
    hs, cs = [], []
    for t in range(T):
        gates = embed_seq[t] @ wih + h @ whh + b
        i = jax.nn.sigmoid(gates[:, 0 * H:1 * H])
        f = jax.nn.sigmoid(gates[:, 1 * H:2 * H])
        g = jnp.tanh(gates[:, 2 * H:3 * H])
        o = jax.nn.sigmoid(gates[:, 3 * H:4 * H])
        c = f * c + i * g
        h = o * jnp.tanh(c)
        hs.append(h)
        cs.append(c)
    return jnp.stack(hs), jnp.stack(cs)


def encoder_reference(source, emb_table, params):
    embed = emb_table[source]
    H = params["whh_f"].shape[0]
    wih_f = params["wih_cat"][:, :4 * H]
    wih_b = params["wih_cat"][:, 4 * H:]
    hs_f, cs_f = _ref_lstm_scan(embed, wih_f, params["whh_f"], params["b_f"])
    hs_b_r, cs_b_r = _ref_lstm_scan(embed[::-1], wih_b, params["whh_b"], params["b_b"])
    hs_b, cs_b = hs_b_r[::-1], cs_b_r[::-1]
    hs = jnp.transpose(hs_f + hs_b, (1, 0, 2))
    mask = (source == PAD_IDX).T
    return {"hs_f": hs_f, "cs_f": cs_f, "hs_b": hs_b, "cs_b": cs_b, "hs": hs, "mask": mask}


# ----------------------------------------------------------------------------- params

def init_params(key, vocab_size, E, H):
    """Deterministic init matching nn.LSTMCell parameter shapes, pre-packed for the kernel.

    nn.LSTMCell: W_ih:(4H,E), W_hh:(4H,H), b_ih/b_hh:(4H,), gate order i,f,g,o.
    Packed here (pure reshape/transpose glue) as:
      wih_cat : (E, 8H) = [W_ih_f^T | W_ih_b^T]    (fused x-projection, both directions)
      whh_*   : (H, 4H) = W_hh^T                   (fused recurrent matmul)
      b_*     : (1, 4H) = b_ih + b_hh
    """
    ks = jax.random.split(key, 9)
    bound = 1.0 / jnp.sqrt(H)

    def u(k, shape):
        return jax.random.uniform(k, shape, jnp.float32, -bound, bound)

    emb = jax.random.normal(ks[0], (vocab_size, E), jnp.float32) * 0.1
    emb = emb.at[PAD_IDX].set(0.0)  # padding_idx=0 row initialized to zero

    def make_dir(k0, k1, k2, k3):
        W_ih = u(k0, (4 * H, E))
        W_hh = u(k1, (4 * H, H))
        b = u(k2, (4 * H,)) + u(k3, (4 * H,))
        return W_ih.T, W_hh.T, b.reshape(1, 4 * H)    # (E,4H), (H,4H), (1,4H)

    wih_f, whh_f, b_f = make_dir(ks[1], ks[2], ks[3], ks[4])
    wih_b, whh_b, b_b = make_dir(ks[5], ks[6], ks[7], ks[8])
    wih_cat = jnp.concatenate([wih_f, wih_b], axis=1)  # (E, 8H)
    return emb, {"wih_cat": wih_cat, "whh_f": whh_f, "whh_b": whh_b,
                 "b_f": b_f, "b_b": b_b}


# ----------------------------------------------------------------------------- main

if __name__ == "__main__":
    T, B, E, H, VOCAB = 8, 8, 32, 32, 20   # 4H = 128 -> lane-dense gates & output

    key = jax.random.PRNGKey(0)
    k_src, k_par = jax.random.split(key)

    source = jax.random.randint(k_src, (T, B), 0, VOCAB, dtype=jnp.int32)
    source = source.at[-2:, :3].set(PAD_IDX)  # some padding so the mask is non-trivial

    emb_table, params = init_params(k_par, VOCAB, E, H)

    out = encoder_forward(source, emb_table, params)
    jax.block_until_ready(out)

    ref = encoder_reference(source, emb_table, params)
    for name in ("hs_f", "cs_f", "hs_b", "cs_b", "hs"):
        if not jnp.allclose(out[name], ref[name], atol=1e-5, rtol=1e-5):
            raise AssertionError(f"mismatch in {name}")
    if not bool(jnp.all(out["mask"] == ref["mask"])):
        raise AssertionError("mismatch in mask")

    print("KERNEL_OK")
</pallas_src>

<mosaic_0001>
module attributes {stable_mosaic.version = 11 : i64} {
  func.func @bilstm_kernel(%arg0: memref<8x8x32xf32, #tpu.memory_space<vmem>>, %arg1: memref<32x256xf32, #tpu.memory_space<vmem>>, %arg2: memref<32x128xf32, #tpu.memory_space<vmem>>, %arg3: memref<32x128xf32, #tpu.memory_space<vmem>>, %arg4: memref<1x128xf32, #tpu.memory_space<vmem>>, %arg5: memref<1x128xf32, #tpu.memory_space<vmem>>, %arg6: memref<8x8x128xf32, #tpu.memory_space<vmem>>, %arg7: memref<8x8x256xf32, #tpu.memory_space<vmem>>) attributes {dimension_semantics = [], scalar_prefetch = 0 : i64, scratch_operands = 1 : i64, tpu.core_type = #tpu.core_type<tc>} {
    %c0 = arith.constant 0 : index
    %c0_0 = arith.constant 0 : index
    %c0_1 = arith.constant 0 : index
    %0 = vector.load %arg0[%c0, %c0_0, %c0_1] : memref<8x8x32xf32, #tpu.memory_space<vmem>>, vector<8x8x32xf32>
    %1 = vector.shape_cast %0 : vector<8x8x32xf32> to vector<64x32xf32>
    %c0_2 = arith.constant 0 : index
    %c0_3 = arith.constant 0 : index
    %2 = vector.load %arg1[%c0_2, %c0_3] : memref<32x256xf32, #tpu.memory_space<vmem>>, vector<32x256xf32>
    %cst = arith.constant dense<0.000000e+00> : vector<64x256xf32>
    %3 = tpu.matmul %1, %2, %cst {dimension_numbers = #tpu.dot_dimension_numbers<[1], [0], [0], [1], [0, 0, 1, 1], [], []>} : vector<64x32xf32>, vector<32x256xf32>, vector<64x256xf32> -> vector<64x256xf32>
    %4 = vector.shape_cast %3 : vector<64x256xf32> to vector<8x8x256xf32>
    %c0_4 = arith.constant 0 : index
    %c0_5 = arith.constant 0 : index
    %c0_6 = arith.constant 0 : index
    %5 = vector.load %arg7[%c0_4, %c0_5, %c0_6] : memref<8x8x256xf32, #tpu.memory_space<vmem>>, vector<8x8x256xf32>
    tpu.vector_store %arg7[%c0_4, %c0_5, %c0_6], %4 {strides = array<i32>} : memref<8x8x256xf32, #tpu.memory_space<vmem>>, vector<8x8x256xf32>,
    %c0_7 = arith.constant 0 : index
    %c0_8 = arith.constant 0 : index
    %6 = vector.load %arg2[%c0_7, %c0_8] : memref<32x128xf32, #tpu.memory_space<vmem>>, vector<32x128xf32>
    %c0_9 = arith.constant 0 : index
    %c0_10 = arith.constant 0 : index
    %7 = vector.load %arg3[%c0_9, %c0_10] : memref<32x128xf32, #tpu.memory_space<vmem>>, vector<32x128xf32>
    %c0_11 = arith.constant 0 : index
    %c0_12 = arith.constant 0 : index
    %8 = vector.load %arg4[%c0_11, %c0_12] : memref<1x128xf32, #tpu.memory_space<vmem>>, vector<1x128xf32>
    %c0_13 = arith.constant 0 : index
    %c0_14 = arith.constant 0 : index
    %9 = vector.load %arg5[%c0_13, %c0_14] : memref<1x128xf32, #tpu.memory_space<vmem>>, vector<1x128xf32>
    %cst_15 = arith.constant 0.000000e+00 : f32
    %10 = vector.broadcast %cst_15 : f32 to vector<8x32xf32>
    %c0_i32 = arith.constant 0 : i32
    %11 = arith.index_cast %c0_i32 : i32 to index
    %c0_16 = arith.constant 0 : index
    %c0_17 = arith.constant 0 : index
    %12 = vector.load %arg7[%11, %c0_16, %c0_17] : memref<8x8x256xf32, #tpu.memory_space<vmem>>, vector<1x8x256xf32>
    %13 = vector.shape_cast %12 : vector<1x8x256xf32> to vector<8x256xf32>
    %c7_i32 = arith.constant 7 : i32
    %14 = arith.subi %c7_i32, %c0_i32 : i32
    %15 = arith.index_cast %14 : i32 to index
    %c0_18 = arith.constant 0 : index
    %c0_19 = arith.constant 0 : index
    %16 = vector.load %arg7[%15, %c0_18, %c0_19] : memref<8x8x256xf32, #tpu.memory_space<vmem>>, vector<1x8x256xf32>
    %17 = vector.shape_cast %16 : vector<1x8x256xf32> to vector<8x256xf32>
    %18 = vector.extract_strided_slice %13 {offsets = [0, 0], sizes = [8, 128], strides = [1, 1]} : vector<8x256xf32> to vector<8x128xf32>
    %cst_20 = arith.constant dense<0.000000e+00> : vector<8x128xf32>
    %19 = tpu.matmul %10, %6, %cst_20 {dimension_numbers = #tpu.dot_dimension_numbers<[1], [0], [0], [1], [0, 0, 1, 1], [], []>} : vector<8x32xf32>, vector<32x128xf32>, vector<8x128xf32> -> vector<8x128xf32>
    %20 = arith.addf %18, %19 : vector<8x128xf32>
    %21 = vector.broadcast %8 : vector<1x128xf32> to vector<8x128xf32>
    %22 = arith.addf %20, %21 : vector<8x128xf32>
    %23 = vector.extract_strided_slice %22 {offsets = [0, 0], sizes = [8, 32], strides = [1, 1]} : vector<8x128xf32> to vector<8x32xf32>
    %24 = arith.negf %23 : vector<8x32xf32>
    %25 = math.exp %24 : vector<8x32xf32>
    %cst_21 = arith.constant 1.000000e+00 : f32
    %26 = vector.broadcast %cst_21 : f32 to vector<8x32xf32>
    %27 = arith.addf %26, %25 : vector<8x32xf32>
    %28 = arith.divf %26, %27 : vector<8x32xf32>
    %29 = vector.extract_strided_slice %22 {offsets = [0, 32], sizes = [8, 32], strides = [1, 1]} : vector<8x128xf32> to vector<8x32xf32>
    %30 = arith.negf %29 : vector<8x32xf32>
    %31 = math.exp %30 : vector<8x32xf32>
    %cst_22 = arith.constant 1.000000e+00 : f32
    %32 = vector.broadcast %cst_22 : f32 to vector<8x32xf32>
    %33 = arith.addf %32, %31 : vector<8x32xf32>
    %34 = arith.divf %32, %33 : vector<8x32xf32>
    %35 = vector.extract_strided_slice %22 {offsets = [0, 64], sizes = [8, 32], strides = [1, 1]} : vector<8x128xf32> to vector<8x32xf32>
    %36 = math.tanh %35 : vector<8x32xf32>
    %37 = vector.extract_strided_slice %22 {offsets = [0, 96], sizes = [8, 32], strides = [1, 1]} : vector<8x128xf32> to vector<8x32xf32>
    %38 = arith.negf %37 : vector<8x32xf32>
    %39 = math.exp %38 : vector<8x32xf32>
    %cst_23 = arith.constant 1.000000e+00 : f32
    %40 = vector.broadcast %cst_23 : f32 to vector<8x32xf32>
    %41 = arith.addf %40, %39 : vector<8x32xf32>
    %42 = arith.divf %40, %41 : vector<8x32xf32>
    %43 = arith.mulf %34, %10 : vector<8x32xf32>
    %44 = arith.mulf %28, %36 : vector<8x32xf32>
    %45 = arith.addf %43, %44 : vector<8x32xf32>
    %46 = math.tanh %45 : vector<8x32xf32>
    %47 = arith.mulf %42, %46 : vector<8x32xf32>
    %48 = vector.extract_strided_slice %17 {offsets = [0, 128], sizes = [8, 128], strides = [1, 1]} : vector<8x256xf32> to vector<8x128xf32>
    %cst_24 = arith.constant dense<0.000000e+00> : vector<8x128xf32>
    %49 = tpu.matmul %10, %7, %cst_24 {dimension_numbers = #tpu.dot_dimension_numbers<[1], [0], [0], [1], [0, 0, 1, 1], [], []>} : vector<8x32xf32>, vector<32x128xf32>, vector<8x128xf32> -> vector<8x128xf32>
    %50 = arith.addf %48, %49 : vector<8x128xf32>
    %51 = vector.broadcast %9 : vector<1x128xf32> to vector<8x128xf32>
    %52 = arith.addf %50, %51 : vector<8x128xf32>
    %53 = vector.extract_strided_slice %52 {offsets = [0, 0], sizes = [8, 32], strides = [1, 1]} : vector<8x128xf32> to vector<8x32xf32>
    %54 = arith.negf %53 : vector<8x32xf32>
    %55 = math.exp %54 : vector<8x32xf32>
    %cst_25 = arith.constant 1.000000e+00 : f32
    %56 = vector.broadcast %cst_25 : f32 to vector<8x32xf32>
    %57 = arith.addf %56, %55 : vector<8x32xf32>
    %58 = arith.divf %56, %57 : vector<8x32xf32>
    %59 = vector.extract_strided_slice %52 {offsets = [0, 32], sizes = [8, 32], strides = [1, 1]} : vector<8x128xf32> to vector<8x32xf32>
    %60 = arith.negf %59 : vector<8x32xf32>
    %61 = math.exp %60 : vector<8x32xf32>
    %cst_26 = arith.constant 1.000000e+00 : f32
    %62 = vector.broadcast %cst_26 : f32 to vector<8x32xf32>
    %63 = arith.addf %62, %61 : vector<8x32xf32>
    %64 = arith.divf %62, %63 : vector<8x32xf32>
    %65 = vector.extract_strided_slice %52 {offsets = [0, 64], sizes = [8, 32], strides = [1, 1]} : vector<8x128xf32> to vector<8x32xf32>
    %66 = math.tanh %65 : vector<8x32xf32>
    %67 = vector.extract_strided_slice %52 {offsets = [0, 96], sizes = [8, 32], strides = [1, 1]} : vector<8x128xf32> to vector<8x32xf32>
    %68 = arith.negf %67 : vector<8x32xf32>
    %69 = math.exp %68 : vector<8x32xf32>
    %cst_27 = arith.constant 1.000000e+00 : f32
    %70 = vector.broadcast %cst_27 : f32 to vector<8x32xf32>
    %71 = arith.addf %70, %69 : vector<8x32xf32>
    %72 = arith.divf %70, %71 : vector<8x32xf32>
    %73 = arith.mulf %64, %10 : vector<8x32xf32>
    %74 = arith.mulf %58, %66 : vector<8x32xf32>
    %75 = arith.addf %73, %74 : vector<8x32xf32>
    %76 = math.tanh %75 : vector<8x32xf32>
    %77 = arith.mulf %72, %76 : vector<8x32xf32>
    %78 = tpu.concatenate %47, %45, %77, %75 in 1 : vector<8x32xf32>, vector<8x32xf32>, vector<8x32xf32>, vector<8x32xf32> -> vector<8x128xf32>
    %79 = arith.index_cast %c0_i32 : i32 to index
    %c0_28 = arith.constant 0 : index
    %c0_29 = arith.constant 0 : index
    %80 = vector.load %arg6[%79, %c0_28, %c0_29] : memref<8x8x128xf32, #tpu.memory_space<vmem>>, vector<1x8x128xf32>
    %81 = vector.shape_cast %80 : vector<1x8x128xf32> to vector<8x128xf32>
    %82 = vector.shape_cast %78 : vector<8x128xf32> to vector<1x8x128xf32>
    tpu.vector_store %arg6[%79, %c0_28, %c0_29], %82 {strides = array<i32>} : memref<8x8x128xf32, #tpu.memory_space<vmem>>, vector<1x8x128xf32>,
    %c1_i32 = arith.constant 1 : i32
    %83 = arith.index_cast %c1_i32 : i32 to index
    %c0_30 = arith.constant 0 : index
    %c0_31 = arith.constant 0 : index
    %84 = vector.load %arg7[%83, %c0_30, %c0_31] : memref<8x8x256xf32, #tpu.memory_space<vmem>>, vector<1x8x256xf32>
    %85 = vector.shape_cast %84 : vector<1x8x256xf32> to vector<8x256xf32>
    %c7_i32_32 = arith.constant 7 : i32
    %86 = arith.subi %c7_i32_32, %c1_i32 : i32
    %87 = arith.index_cast %86 : i32 to index
    %c0_33 = arith.constant 0 : index
    %c0_34 = arith.constant 0 : index
    %88 = vector.load %arg7[%87, %c0_33, %c0_34] : memref<8x8x256xf32, #tpu.memory_space<vmem>>, vector<1x8x256xf32>
    %89 = vector.shape_cast %88 : vector<1x8x256xf32> to vector<8x256xf32>
    %90 = vector.extract_strided_slice %85 {offsets = [0, 0], sizes = [8, 128], strides = [1, 1]} : vector<8x256xf32> to vector<8x128xf32>
    %cst_35 = arith.constant dense<0.000000e+00> : vector<8x128xf32>
    %91 = tpu.matmul %47, %6, %cst_35 {dimension_numbers = #tpu.dot_dimension_numbers<[1], [0], [0], [1], [0, 0, 1, 1], [], []>} : vector<8x32xf32>, vector<32x128xf32>, vector<8x128xf32> -> vector<8x128xf32>
    %92 = arith.addf %90, %91 : vector<8x128xf32>
    %93 = vector.broadcast %8 : vector<1x128xf32> to vector<8x128xf32>
    %94 = arith.addf %92, %93 : vector<8x128xf32>
    %95 = vector.extract_strided_slice %94 {offsets = [0, 0], sizes = [8, 32], strides = [1, 1]} : vector<8x128xf32> to vector<8x32xf32>
    %96 = arith.negf %95 : vector<8x32xf32>
    %97 = math.exp %96 : vector<8x32xf32>
    %cst_36 = arith.constant 1.000000e+00 : f32
    %98 = vector.broadcast %cst_36 : f32 to vector<8x32xf32>
    %99 = arith.addf %98, %97 : vector<8x32xf32>
    %100 = arith.divf %98, %99 : vector<8x32xf32>
    %101 = vector.extract_strided_slice %94 {offsets = [0, 32], sizes = [8, 32], strides = [1, 1]} : vector<8x128xf32> to vector<8x32xf32>
    %102 = arith.negf %101 : vector<8x32xf32>
    %103 = math.exp %102 : vector<8x32xf32>
    %cst_37 = arith.constant 1.000000e+00 : f32
    %104 = vector.broadcast %cst_37 : f32 to vector<8x32xf32>
    %105 = arith.addf %104, %103 : vector<8x32xf32>
    %106 = arith.divf %104, %105 : vector<8x32xf32>
    %107 = vector.extract_strided_slice %94 {offsets = [0, 64], sizes = [8, 32], strides = [1, 1]} : vector<8x128xf32> to vector<8x32xf32>
    %108 = math.tanh %107 : vector<8x32xf32>
    %109 = vector.extract_strided_slice %94 {offsets = [0, 96], sizes = [8, 32], strides = [1, 1]} : vector<8x128xf32> to vector<8x32xf32>
    %110 = arith.negf %109 : vector<8x32xf32>
    %111 = math.exp %110 : vector<8x32xf32>
    %cst_38 = arith.constant 1.000000e+00 : f32
    %112 = vector.broadcast %cst_38 : f32 to vector<8x32xf32>
    %113 = arith.addf %112, %111 : vector<8x32xf32>
    %114 = arith.divf %112, %113 : vector<8x32xf32>
    %115 = arith.mulf %106, %45 : vector<8x32xf32>
    %116 = arith.mulf %100, %108 : vector<8x32xf32>
    %117 = arith.addf %115, %116 : vector<8x32xf32>
    %118 = math.tanh %117 : vector<8x32xf32>
    %119 = arith.mulf %114, %118 : vector<8x32xf32>
    %120 = vector.extract_strided_slice %89 {offsets = [0, 128], sizes = [8, 128], strides = [1, 1]} : vector<8x256xf32> to vector<8x128xf32>
    %cst_39 = arith.constant dense<0.000000e+00> : vector<8x128xf32>
    %121 = tpu.matmul %77, %7, %cst_39 {dimension_numbers = #tpu.dot_dimension_numbers<[1], [0], [0], [1], [0, 0, 1, 1], [], []>} : vector<8x32xf32>, vector<32x128xf32>, vector<8x128xf32> -> vector<8x128xf32>
    %122 = arith.addf %120, %121 : vector<8x128xf32>
    %123 = vector.broadcast %9 : vector<1x128xf32> to vector<8x128xf32>
    %124 = arith.addf %122, %123 : vector<8x128xf32>
    %125 = vector.extract_strided_slice %124 {offsets = [0, 0], sizes = [8, 32], strides = [1, 1]} : vector<8x128xf32> to vector<8x32xf32>
    %126 = arith.negf %125 : vector<8x32xf32>
    %127 = math.exp %126 : vector<8x32xf32>
    %cst_40 = arith.constant 1.000000e+00 : f32
    %128 = vector.broadcast %cst_40 : f32 to vector<8x32xf32>
    %129 = arith.addf %128, %127 : vector<8x32xf32>
    %130 = arith.divf %128, %129 : vector<8x32xf32>
    %131 = vector.extract_strided_slice %124 {offsets = [0, 32], sizes = [8, 32], strides = [1, 1]} : vector<8x128xf32> to vector<8x32xf32>
    %132 = arith.negf %131 : vector<8x32xf32>
    %133 = math.exp %132 : vector<8x32xf32>
    %cst_41 = arith.constant 1.000000e+00 : f32
    %134 = vector.broadcast %cst_41 : f32 to vector<8x32xf32>
    %135 = arith.addf %134, %133 : vector<8x32xf32>
    %136 = arith.divf %134, %135 : vector<8x32xf32>
    %137 = vector.extract_strided_slice %124 {offsets = [0, 64], sizes = [8, 32], strides = [1, 1]} : vector<8x128xf32> to vector<8x32xf32>
    %138 = math.tanh %137 : vector<8x32xf32>
    %139 = vector.extract_strided_slice %124 {offsets = [0, 96], sizes = [8, 32], strides = [1, 1]} : vector<8x128xf32> to vector<8x32xf32>
    %140 = arith.negf %139 : vector<8x32xf32>
    %141 = math.exp %140 : vector<8x32xf32>
    %cst_42 = arith.constant 1.000000e+00 : f32
    %142 = vector.broadcast %cst_42 : f32 to vector<8x32xf32>
    %143 = arith.addf %142, %141 : vector<8x32xf32>
    %144 = arith.divf %142, %143 : vector<8x32xf32>
    %145 = arith.mulf %136, %75 : vector<8x32xf32>
    %146 = arith.mulf %130, %138 : vector<8x32xf32>
    %147 = arith.addf %145, %146 : vector<8x32xf32>
    %148 = math.tanh %147 : vector<8x32xf32>
    %149 = arith.mulf %144, %148 : vector<8x32xf32>
    %150 = tpu.concatenate %119, %117, %149, %147 in 1 : vector<8x32xf32>, vector<8x32xf32>, vector<8x32xf32>, vector<8x32xf32> -> vector<8x128xf32>
    %151 = arith.index_cast %c1_i32 : i32 to index
    %c0_43 = arith.constant 0 : index
    %c0_44 = arith.constant 0 : index
    %152 = vector.load %arg6[%151, %c0_43, %c0_44] : memref<8x8x128xf32, #tpu.memory_space<vmem>>, vector<1x8x128xf32>
    %153 = vector.shape_cast %152 : vector<1x8x128xf32> to vector<8x128xf32>
    %154 = vector.shape_cast %150 : vector<8x128xf32> to vector<1x8x128xf32>
    tpu.vector_store %arg6[%151, %c0_43, %c0_44], %154 {strides = array<i32>} : memref<8x8x128xf32, #tpu.memory_space<vmem>>, vector<1x8x128xf32>,
    %c2_i32 = arith.constant 2 : i32
    %155 = arith.index_cast %c2_i32 : i32 to index
    %c0_45 = arith.constant 0 : index
    %c0_46 = arith.constant 0 : index
    %156 = vector.load %arg7[%155, %c0_45, %c0_46] : memref<8x8x256xf32, #tpu.memory_space<vmem>>, vector<1x8x256xf32>
    %157 = vector.shape_cast %156 : vector<1x8x256xf32> to vector<8x256xf32>
    %c7_i32_47 = arith.constant 7 : i32
    %158 = arith.subi %c7_i32_47, %c2_i32 : i32
    %159 = arith.index_cast %158 : i32 to index
    %c0_48 = arith.constant 0 : index
    %c0_49 = arith.constant 0 : index
    %160 = vector.load %arg7[%159, %c0_48, %c0_49] : memref<8x8x256xf32, #tpu.memory_space<vmem>>, vector<1x8x256xf32>
    %161 = vector.shape_cast %160 : vector<1x8x256xf32> to vector<8x256xf32>
    %162 = vector.extract_strided_slice %157 {offsets = [0, 0], sizes = [8, 128], strides = [1, 1]} : vector<8x256xf32> to vector<8x128xf32>
    %cst_50 = arith.constant dense<0.000000e+00> : vector<8x128xf32>
    %163 = tpu.matmul %119, %6, %cst_50 {dimension_numbers = #tpu.dot_dimension_numbers<[1], [0], [0], [1], [0, 0, 1, 1], [], []>} : vector<8x32xf32>, vector<32x128xf32>, vector<8x128xf32> -> vector<8x128xf32>
    %164 = arith.addf %162, %163 : vector<8x128xf32>
    %165 = vector.broadcast %8 : vector<1x128xf32> to vector<8x128xf32>
    %166 = arith.addf %164, %165 : vector<8x128xf32>
    %167 = vector.extract_strided_slice %166 {offsets = [0, 0], sizes = [8, 32], strides = [1, 1]} : vector<8x128xf32> to vector<8x32xf32>
    %168 = arith.negf %167 : vector<8x32xf32>
    %169 = math.exp %168 : vector<8x32xf32>
    %cst_51 = arith.constant 1.000000e+00 : f32
    %170 = vector.broadcast %cst_51 : f32 to vector<8x32xf32>
    %171 = arith.addf %170, %169 : vector<8x32xf32>
    %172 = arith.divf %170, %171 : vector<8x32xf32>
    %173 = vector.extract_strided_slice %166 {offsets = [0, 32], sizes = [8, 32], strides = [1, 1]} : vector<8x128xf32> to vector<8x32xf32>
    %174 = arith.negf %173 : vector<8x32xf32>
    %175 = math.exp %174 : vector<8x32xf32>
    %cst_52 = arith.constant 1.000000e+00 : f32
    %176 = vector.broadcast %cst_52 : f32 to vector<8x32xf32>
    %177 = arith.addf %176, %175 : vector<8x32xf32>
    %178 = arith.divf %176, %177 : vector<8x32xf32>
    %179 = vector.extract_strided_slice %166 {offsets = [0, 64], sizes = [8, 32], strides = [1, 1]} : vector<8x128xf32> to vector<8x32xf32>
    %180 = math.tanh %179 : vector<8x32xf32>
    %181 = vector.extract_strided_slice %166 {offsets = [0, 96], sizes = [8, 32], strides = [1, 1]} : vector<8x128xf32> to vector<8x32xf32>
    %182 = arith.negf %181 : vector<8x32xf32>
    %183 = math.exp %182 : vector<8x32xf32>
    %cst_53 = arith.constant 1.000000e+00 : f32
    %184 = vector.broadcast %cst_53 : f32 to vector<8x32xf32>
    %185 = arith.addf %184, %183 : vector<8x32xf32>
    %186 = arith.divf %184, %185 : vector<8x32xf32>
    %187 = arith.mulf %178, %117 : vector<8x32xf32>
    %188 = arith.mulf %172, %180 : vector<8x32xf32>
    %189 = arith.addf %187, %188 : vector<8x32xf32>
    %190 = math.tanh %189 : vector<8x32xf32>
    %191 = arith.mulf %186, %190 : vector<8x32xf32>
    %192 = vector.extract_strided_slice %161 {offsets = [0, 128], sizes = [8, 128], strides = [1, 1]} : vector<8x256xf32> to vector<8x128xf32>
    %cst_54 = arith.constant dense<0.000000e+00> : vector<8x128xf32>
    %193 = tpu.matmul %149, %7, %cst_54 {dimension_numbers = #tpu.dot_dimension_numbers<[1], [0], [0], [1], [0, 0, 1, 1], [], []>} : vector<8x32xf32>, vector<32x128xf32>, vector<8x128xf32> -> vector<8x128xf32>
    %194 = arith.addf %192, %193 : vector<8x128xf32>
    %195 = vector.broadcast %9 : vector<1x128xf32> to vector<8x128xf32>
    %196 = arith.addf %194, %195 : vector<8x128xf32>
    %197 = vector.extract_strided_slice %196 {offsets = [0, 0], sizes = [8, 32], strides = [1, 1]} : vector<8x128xf32> to vector<8x32xf32>
    %198 = arith.negf %197 : vector<8x32xf32>
    %199 = math.exp %198 : vector<8x32xf32>
    %cst_55 = arith.constant 1.000000e+00 : f32
    %200 = vector.broadcast %cst_55 : f32 to vector<8x32xf32>
    %201 = arith.addf %200, %199 : vector<8x32xf32>
    %202 = arith.divf %200, %201 : vector<8x32xf32>
    %203 = vector.extract_strided_slice %196 {offsets = [0, 32], sizes = [8, 32], strides = [1, 1]} : vector<8x128xf32> to vector<8x32xf32>
    %204 = arith.negf %203 : vector<8x32xf32>
    %205 = math.exp %204 : vector<8x32xf32>
    %cst_56 = arith.constant 1.000000e+00 : f32
    %206 = vector.broadcast %cst_56 : f32 to vector<8x32xf32>
    %207 = arith.addf %206, %205 : vector<8x32xf32>
    %208 = arith.divf %206, %207 : vector<8x32xf32>
    %209 = vector.extract_strided_slice %196 {offsets = [0, 64], sizes = [8, 32], strides = [1, 1]} : vector<8x128xf32> to vector<8x32xf32>
    %210 = math.tanh %209 : vector<8x32xf32>
    %211 = vector.extract_strided_slice %196 {offsets = [0, 96], sizes = [8, 32], strides = [1, 1]} : vector<8x128xf32> to vector<8x32xf32>
    %212 = arith.negf %211 : vector<8x32xf32>
    %213 = math.exp %212 : vector<8x32xf32>
    %cst_57 = arith.constant 1.000000e+00 : f32
    %214 = vector.broadcast %cst_57 : f32 to vector<8x32xf32>
    %215 = arith.addf %214, %213 : vector<8x32xf32>
    %216 = arith.divf %214, %215 : vector<8x32xf32>
    %217 = arith.mulf %208, %147 : vector<8x32xf32>
    %218 = arith.mulf %202, %210 : vector<8x32xf32>
    %219 = arith.addf %217, %218 : vector<8x32xf32>
    %220 = math.tanh %219 : vector<8x32xf32>
    %221 = arith.mulf %216, %220 : vector<8x32xf32>
    %222 = tpu.concatenate %191, %189, %221, %219 in 1 : vector<8x32xf32>, vector<8x32xf32>, vector<8x32xf32>, vector<8x32xf32> -> vector<8x128xf32>
    %223 = arith.index_cast %c2_i32 : i32 to index
    %c0_58 = arith.constant 0 : index
    %c0_59 = arith.constant 0 : index
    %224 = vector.load %arg6[%223, %c0_58, %c0_59] : memref<8x8x128xf32, #tpu.memory_space<vmem>>, vector<1x8x128xf32>
    %225 = vector.shape_cast %224 : vector<1x8x128xf32> to vector<8x128xf32>
    %226 = vector.shape_cast %222 : vector<8x128xf32> to vector<1x8x128xf32>
    tpu.vector_store %arg6[%223, %c0_58, %c0_59], %226 {strides = array<i32>} : memref<8x8x128xf32, #tpu.memory_space<vmem>>, vector<1x8x128xf32>,
    %c3_i32 = arith.constant 3 : i32
    %227 = arith.index_cast %c3_i32 : i32 to index
    %c0_60 = arith.constant 0 : index
    %c0_61 = arith.constant 0 : index
    %228 = vector.load %arg7[%227, %c0_60, %c0_61] : memref<8x8x256xf32, #tpu.memory_space<vmem>>, vector<1x8x256xf32>
    %229 = vector.shape_cast %228 : vector<1x8x256xf32> to vector<8x256xf32>
    %c7_i32_62 = arith.constant 7 : i32
    %230 = arith.subi %c7_i32_62, %c3_i32 : i32
    %231 = arith.index_cast %230 : i32 to index
    %c0_63 = arith.constant 0 : index
    %c0_64 = arith.constant 0 : index
    %232 = vector.load %arg7[%231, %c0_63, %c0_64] : memref<8x8x256xf32, #tpu.memory_space<vmem>>, vector<1x8x256xf32>
    %233 = vector.shape_cast %232 : vector<1x8x256xf32> to vector<8x256xf32>
    %234 = vector.extract_strided_slice %229 {offsets = [0, 0], sizes = [8, 128], strides = [1, 1]} : vector<8x256xf32> to vector<8x128xf32>
    %cst_65 = arith.constant dense<0.000000e+00> : vector<8x128xf32>
    %235 = tpu.matmul %191, %6, %cst_65 {dimension_numbers = #tpu.dot_dimension_numbers<[1], [0], [0], [1], [0, 0, 1, 1], [], []>} : vector<8x32xf32>, vector<32x128xf32>, vector<8x128xf32> -> vector<8x128xf32>
    %236 = arith.addf %234, %235 : vector<8x128xf32>
    %237 = vector.broadcast %8 : vector<1x128xf32> to vector<8x128xf32>
    %238 = arith.addf %236, %237 : vector<8x128xf32>
    %239 = vector.extract_strided_slice %238 {offsets = [0, 0], sizes = [8, 32], strides = [1, 1]} : vector<8x128xf32> to vector<8x32xf32>
    %240 = arith.negf %239 : vector<8x32xf32>
    %241 = math.exp %240 : vector<8x32xf32>
    %cst_66 = arith.constant 1.000000e+00 : f32
    %242 = vector.broadcast %cst_66 : f32 to vector<8x32xf32>
    %243 = arith.addf %242, %241 : vector<8x32xf32>
    %244 = arith.divf %242, %243 : vector<8x32xf32>
    %245 = vector.extract_strided_slice %238 {offsets = [0, 32], sizes = [8, 32], strides = [1, 1]} : vector<8x128xf32> to vector<8x32xf32>
    %246 = arith.negf %245 : vector<8x32xf32>
    %247 = math.exp %246 : vector<8x32xf32>
    %cst_67 = arith.constant 1.000000e+00 : f32
    %248 = vector.broadcast %cst_67 : f32 to vector<8x32xf32>
    %249 = arith.addf %248, %247 : vector<8x32xf32>
    %250 = arith.divf %248, %249 : vector<8x32xf32>
    %251 = vector.extract_strided_slice %238 {offsets = [0, 64], sizes = [8, 32], strides = [1, 1]} : vector<8x128xf32> to vector<8x32xf32>
    %252 = math.tanh %251 : vector<8x32xf32>
    %253 = vector.extract_strided_slice %238 {offsets = [0, 96], sizes = [8, 32], strides = [1, 1]} : vector<8x128xf32> to vector<8x32xf32>
    %254 = arith.negf %253 : vector<8x32xf32>
    %255 = math.exp %254 : vector<8x32xf32>
    %cst_68 = arith.constant 1.000000e+00 : f32
    %256 = vector.broadcast %cst_68 : f32 to vector<8x32xf32>
    %257 = arith.addf %256, %255 : vector<8x32xf32>
    %258 = arith.divf %256, %257 : vector<8x32xf32>
    %259 = arith.mulf %250, %189 : vector<8x32xf32>
    %260 = arith.mulf %244, %252 : vector<8x32xf32>
    %261 = arith.addf %259, %260 : vector<8x32xf32>
    %262 = math.tanh %261 : vector<8x32xf32>
    %263 = arith.mulf %258, %262 : vector<8x32xf32>
    %264 = vector.extract_strided_slice %233 {offsets = [0, 128], sizes = [8, 128], strides = [1, 1]} : vector<8x256xf32> to vector<8x128xf32>
    %cst_69 = arith.constant dense<0.000000e+00> : vector<8x128xf32>
    %265 = tpu.matmul %221, %7, %cst_69 {dimension_numbers = #tpu.dot_dimension_numbers<[1], [0], [0], [1], [0, 0, 1, 1], [], []>} : vector<8x32xf32>, vector<32x128xf32>, vector<8x128xf32> -> vector<8x128xf32>
    %266 = arith.addf %264, %265 : vector<8x128xf32>
    %267 = vector.broadcast %9 : vector<1x128xf32> to vector<8x128xf32>
    %268 = arith.addf %266, %267 : vector<8x128xf32>
    %269 = vector.extract_strided_slice %268 {offsets = [0, 0], sizes = [8, 32], strides = [1, 1]} : vector<8x128xf32> to vector<8x32xf32>
    %270 = arith.negf %269 : vector<8x32xf32>
    %271 = math.exp %270 : vector<8x32xf32>
    %cst_70 = arith.constant 1.000000e+00 : f32
    %272 = vector.broadcast %cst_70 : f32 to vector<8x32xf32>
    %273 = arith.addf %272, %271 : vector<8x32xf32>
    %274 = arith.divf %272, %273 : vector<8x32xf32>
    %275 = vector.extract_strided_slice %268 {offsets = [0, 32], sizes = [8, 32], strides = [1, 1]} : vector<8x128xf32> to vector<8x32xf32>
    %276 = arith.negf %275 : vector<8x32xf32>
    %277 = math.exp %276 : vector<8x32xf32>
    %cst_71 = arith.constant 1.000000e+00 : f32
    %278 = vector.broadcast %cst_71 : f32 to vector<8x32xf32>
    %279 = arith.addf %278, %277 : vector<8x32xf32>
    %280 = arith.divf %278, %279 : vector<8x32xf32>
    %281 = vector.extract_strided_slice %268 {offsets = [0, 64], sizes = [8, 32], strides = [1, 1]} : vector<8x128xf32> to vector<8x32xf32>
    %282 = math.tanh %281 : vector<8x32xf32>
    %283 = vector.extract_strided_slice %268 {offsets = [0, 96], sizes = [8, 32], strides = [1, 1]} : vector<8x128xf32> to vector<8x32xf32>
    %284 = arith.negf %283 : vector<8x32xf32>
    %285 = math.exp %284 : vector<8x32xf32>
    %cst_72 = arith.constant 1.000000e+00 : f32
    %286 = vector.broadcast %cst_72 : f32 to vector<8x32xf32>
    %287 = arith.addf %286, %285 : vector<8x32xf32>
    %288 = arith.divf %286, %287 : vector<8x32xf32>
    %289 = arith.mulf %280, %219 : vector<8x32xf32>
    %290 = arith.mulf %274, %282 : vector<8x32xf32>
    %291 = arith.addf %289, %290 : vector<8x32xf32>
    %292 = math.tanh %291 : vector<8x32xf32>
    %293 = arith.mulf %288, %292 : vector<8x32xf32>
    %294 = tpu.concatenate %263, %261, %293, %291 in 1 : vector<8x32xf32>, vector<8x32xf32>, vector<8x32xf32>, vector<8x32xf32> -> vector<8x128xf32>
    %295 = arith.index_cast %c3_i32 : i32 to index
    %c0_73 = arith.constant 0 : index
    %c0_74 = arith.constant 0 : index
    %296 = vector.load %arg6[%295, %c0_73, %c0_74] : memref<8x8x128xf32, #tpu.memory_space<vmem>>, vector<1x8x128xf32>
    %297 = vector.shape_cast %296 : vector<1x8x128xf32> to vector<8x128xf32>
    %298 = vector.shape_cast %294 : vector<8x128xf32> to vector<1x8x128xf32>
    tpu.vector_store %arg6[%295, %c0_73, %c0_74], %298 {strides = array<i32>} : memref<8x8x128xf32, #tpu.memory_space<vmem>>, vector<1x8x128xf32>,
    %c4_i32 = arith.constant 4 : i32
    %299 = arith.index_cast %c4_i32 : i32 to index
    %c0_75 = arith.constant 0 : index
    %c0_76 = arith.constant 0 : index
    %300 = vector.load %arg7[%299, %c0_75, %c0_76] : memref<8x8x256xf32, #tpu.memory_space<vmem>>, vector<1x8x256xf32>
    %301 = vector.shape_cast %300 : vector<1x8x256xf32> to vector<8x256xf32>
    %c7_i32_77 = arith.constant 7 : i32
    %302 = arith.subi %c7_i32_77, %c4_i32 : i32
    %303 = arith.index_cast %302 : i32 to index
    %c0_78 = arith.constant 0 : index
    %c0_79 = arith.constant 0 : index
    %304 = vector.load %arg7[%303, %c0_78, %c0_79] : memref<8x8x256xf32, #tpu.memory_space<vmem>>, vector<1x8x256xf32>
    %305 = vector.shape_cast %304 : vector<1x8x256xf32> to vector<8x256xf32>
    %306 = vector.extract_strided_slice %301 {offsets = [0, 0], sizes = [8, 128], strides = [1, 1]} : vector<8x256xf32> to vector<8x128xf32>
    %cst_80 = arith.constant dense<0.000000e+00> : vector<8x128xf32>
    %307 = tpu.matmul %263, %6, %cst_80 {dimension_numbers = #tpu.dot_dimension_numbers<[1], [0], [0], [1], [0, 0, 1, 1], [], []>} : vector<8x32xf32>, vector<32x128xf32>, vector<8x128xf32> -> vector<8x128xf32>
    %308 = arith.addf %306, %307 : vector<8x128xf32>
    %309 = vector.broadcast %8 : vector<1x128xf32> to vector<8x128xf32>
    %310 = arith.addf %308, %309 : vector<8x128xf32>
    %311 = vector.extract_strided_slice %310 {offsets = [0, 0], sizes = [8, 32], strides = [1, 1]} : vector<8x128xf32> to vector<8x32xf32>
    %312 = arith.negf %311 : vector<8x32xf32>
    %313 = math.exp %312 : vector<8x32xf32>
    %cst_81 = arith.constant 1.000000e+00 : f32
    %314 = vector.broadcast %cst_81 : f32 to vector<8x32xf32>
    %315 = arith.addf %314, %313 : vector<8x32xf32>
    %316 = arith.divf %314, %315 : vector<8x32xf32>
    %317 = vector.extract_strided_slice %310 {offsets = [0, 32], sizes = [8, 32], strides = [1, 1]} : vector<8x128xf32> to vector<8x32xf32>
    %318 = arith.negf %317 : vector<8x32xf32>
    %319 = math.exp %318 : vector<8x32xf32>
    %cst_82 = arith.constant 1.000000e+00 : f32
    %320 = vector.broadcast %cst_82 : f32 to vector<8x32xf32>
    %321 = arith.addf %320, %319 : vector<8x32xf32>
    %322 = arith.divf %320, %321 : vector<8x32xf32>
    %323 = vector.extract_strided_slice %310 {offsets = [0, 64], sizes = [8, 32], strides = [1, 1]} : vector<8x128xf32> to vector<8x32xf32>
    %324 = math.tanh %323 : vector<8x32xf32>
    %325 = vector.extract_strided_slice %310 {offsets = [0, 96], sizes = [8, 32], strides = [1, 1]} : vector<8x128xf32> to vector<8x32xf32>
    %326 = arith.negf %325 : vector<8x32xf32>
    %327 = math.exp %326 : vector<8x32xf32>
    %cst_83 = arith.constant 1.000000e+00 : f32
    %328 = vector.broadcast %cst_83 : f32 to vector<8x32xf32>
    %329 = arith.addf %328, %327 : vector<8x32xf32>
    %330 = arith.divf %328, %329 : vector<8x32xf32>
    %331 = arith.mulf %322, %261 : vector<8x32xf32>
    %332 = arith.mulf %316, %324 : vector<8x32xf32>
    %333 = arith.addf %331, %332 : vector<8x32xf32>
    %334 = math.tanh %333 : vector<8x32xf32>
    %335 = arith.mulf %330, %334 : vector<8x32xf32>
    %336 = vector.extract_strided_slice %305 {offsets = [0, 128], sizes = [8, 128], strides = [1, 1]} : vector<8x256xf32> to vector<8x128xf32>
    %cst_84 = arith.constant dense<0.000000e+00> : vector<8x128xf32>
    %337 = tpu.matmul %293, %7, %cst_84 {dimension_numbers = #tpu.dot_dimension_numbers<[1], [0], [0], [1], [0, 0, 1, 1], [], []>} : vector<8x32xf32>, vector<32x128xf32>, vector<8x128xf32> -> vector<8x128xf32>
    %338 = arith.addf %336, %337 : vector<8x128xf32>
    %339 = vector.broadcast %9 : vector<1x128xf32> to vector<8x128xf32>
    %340 = arith.addf %338, %339 : vector<8x128xf32>
    %341 = vector.extract_strided_slice %340 {offsets = [0, 0], sizes = [8, 32], strides = [1, 1]} : vector<8x128xf32> to vector<8x32xf32>
    %342 = arith.negf %341 : vector<8x32xf32>
    %343 = math.exp %342 : vector<8x32xf32>
    %cst_85 = arith.constant 1.000000e+00 : f32
    %344 = vector.broadcast %cst_85 : f32 to vector<8x32xf32>
    %345 = arith.addf %344, %343 : vector<8x32xf32>
    %346 = arith.divf %344, %345 : vector<8x32xf32>
    %347 = vector.extract_strided_slice %340 {offsets = [0, 32], sizes = [8, 32], strides = [1, 1]} : vector<8x128xf32> to vector<8x32xf32>
    %348 = arith.negf %347 : vector<8x32xf32>
    %349 = math.exp %348 : vector<8x32xf32>
    %cst_86 = arith.constant 1.000000e+00 : f32
    %350 = vector.broadcast %cst_86 : f32 to vector<8x32xf32>
    %351 = arith.addf %350, %349 : vector<8x32xf32>
    %352 = arith.divf %350, %351 : vector<8x32xf32>
    %353 = vector.extract_strided_slice %340 {offsets = [0, 64], sizes = [8, 32], strides = [1, 1]} : vector<8x128xf32> to vector<8x32xf32>
    %354 = math.tanh %353 : vector<8x32xf32>
    %355 = vector.extract_strided_slice %340 {offsets = [0, 96], sizes = [8, 32], strides = [1, 1]} : vector<8x128xf32> to vector<8x32xf32>
    %356 = arith.negf %355 : vector<8x32xf32>
    %357 = math.exp %356 : vector<8x32xf32>
    %cst_87 = arith.constant 1.000000e+00 : f32
    %358 = vector.broadcast %cst_87 : f32 to vector<8x32xf32>
    %359 = arith.addf %358, %357 : vector<8x32xf32>
    %360 = arith.divf %358, %359 : vector<8x32xf32>
    %361 = arith.mulf %352, %291 : vector<8x32xf32>
    %362 = arith.mulf %346, %354 : vector<8x32xf32>
    %363 = arith.addf %361, %362 : vector<8x32xf32>
    %364 = math.tanh %363 : vector<8x32xf32>
    %365 = arith.mulf %360, %364 : vector<8x32xf32>
    %366 = tpu.concatenate %335, %333, %365, %363 in 1 : vector<8x32xf32>, vector<8x32xf32>, vector<8x32xf32>, vector<8x32xf32> -> vector<8x128xf32>
    %367 = arith.index_cast %c4_i32 : i32 to index
    %c0_88 = arith.constant 0 : index
    %c0_89 = arith.constant 0 : index
    %368 = vector.load %arg6[%367, %c0_88, %c0_89] : memref<8x8x128xf32, #tpu.memory_space<vmem>>, vector<1x8x128xf32>
    %369 = vector.shape_cast %368 : vector<1x8x128xf32> to vector<8x128xf32>
    %370 = vector.shape_cast %366 : vector<8x128xf32> to vector<1x8x128xf32>
    tpu.vector_store %arg6[%367, %c0_88, %c0_89], %370 {strides = array<i32>} : memref<8x8x128xf32, #tpu.memory_space<vmem>>, vector<1x8x128xf32>,
    %c5_i32 = arith.constant 5 : i32
    %371 = arith.index_cast %c5_i32 : i32 to index
    %c0_90 = arith.constant 0 : index
    %c0_91 = arith.constant 0 : index
    %372 = vector.load %arg7[%371, %c0_90, %c0_91] : memref<8x8x256xf32, #tpu.memory_space<vmem>>, vector<1x8x256xf32>
    %373 = vector.shape_cast %372 : vector<1x8x256xf32> to vector<8x256xf32>
    %c7_i32_92 = arith.constant 7 : i32
    %374 = arith.subi %c7_i32_92, %c5_i32 : i32
    %375 = arith.index_cast %374 : i32 to index
    %c0_93 = arith.constant 0 : index
    %c0_94 = arith.constant 0 : index
    %376 = vector.load %arg7[%375, %c0_93, %c0_94] : memref<8x8x256xf32, #tpu.memory_space<vmem>>, vector<1x8x256xf32>
    %377 = vector.shape_cast %376 : vector<1x8x256xf32> to vector<8x256xf32>
    %378 = vector.extract_strided_slice %373 {offsets = [0, 0], sizes = [8, 128], strides = [1, 1]} : vector<8x256xf32> to vector<8x128xf32>
    %cst_95 = arith.constant dense<0.000000e+00> : vector<8x128xf32>
    %379 = tpu.matmul %335, %6, %cst_95 {dimension_numbers = #tpu.dot_dimension_numbers<[1], [0], [0], [1], [0, 0, 1, 1], [], []>} : vector<8x32xf32>, vector<32x128xf32>, vector<8x128xf32> -> vector<8x128xf32>
    %380 = arith.addf %378, %379 : vector<8x128xf32>
    %381 = vector.broadcast %8 : vector<1x128xf32> to vector<8x128xf32>
    %382 = arith.addf %380, %381 : vector<8x128xf32>
    %383 = vector.extract_strided_slice %382 {offsets = [0, 0], sizes = [8, 32], strides = [1, 1]} : vector<8x128xf32> to vector<8x32xf32>
    %384 = arith.negf %383 : vector<8x32xf32>
    %385 = math.exp %384 : vector<8x32xf32>
    %cst_96 = arith.constant 1.000000e+00 : f32
    %386 = vector.broadcast %cst_96 : f32 to vector<8x32xf32>
    %387 = arith.addf %386, %385 : vector<8x32xf32>
    %388 = arith.divf %386, %387 : vector<8x32xf32>
    %389 = vector.extract_strided_slice %382 {offsets = [0, 32], sizes = [8, 32], strides = [1, 1]} : vector<8x128xf32> to vector<8x32xf32>
    %390 = arith.negf %389 : vector<8x32xf32>
    %391 = math.exp %390 : vector<8x32xf32>
    %cst_97 = arith.constant 1.000000e+00 : f32
    %392 = vector.broadcast %cst_97 : f32 to vector<8x32xf32>
    %393 = arith.addf %392, %391 : vector<8x32xf32>
    %394 = arith.divf %392, %393 : vector<8x32xf32>
    %395 = vector.extract_strided_slice %382 {offsets = [0, 64], sizes = [8, 32], strides = [1, 1]} : vector<8x128xf32> to vector<8x32xf32>
    %396 = math.tanh %395 : vector<8x32xf32>
    %397 = vector.extract_strided_slice %382 {offsets = [0, 96], sizes = [8, 32], strides = [1, 1]} : vector<8x128xf32> to vector<8x32xf32>
    %398 = arith.negf %397 : vector<8x32xf32>
    %399 = math.exp %398 : vector<8x32xf32>
    %cst_98 = arith.constant 1.000000e+00 : f32
    %400 = vector.broadcast %cst_98 : f32 to vector<8x32xf32>
    %401 = arith.addf %400, %399 : vector<8x32xf32>
    %402 = arith.divf %400, %401 : vector<8x32xf32>
    %403 = arith.mulf %394, %333 : vector<8x32xf32>
    %404 = arith.mulf %388, %396 : vector<8x32xf32>
    %405 = arith.addf %403, %404 : vector<8x32xf32>
    %406 = math.tanh %405 : vector<8x32xf32>
    %407 = arith.mulf %402, %406 : vector<8x32xf32>
    %408 = vector.extract_strided_slice %377 {offsets = [0, 128], sizes = [8, 128], strides = [1, 1]} : vector<8x256xf32> to vector<8x128xf32>
    %cst_99 = arith.constant dense<0.000000e+00> : vector<8x128xf32>
    %409 = tpu.matmul %365, %7, %cst_99 {dimension_numbers = #tpu.dot_dimension_numbers<[1], [0], [0], [1], [0, 0, 1, 1], [], []>} : vector<8x32xf32>, vector<32x128xf32>, vector<8x128xf32> -> vector<8x128xf32>
    %410 = arith.addf %408, %409 : vector<8x128xf32>
    %411 = vector.broadcast %9 : vector<1x128xf32> to vector<8x128xf32>
    %412 = arith.addf %410, %411 : vector<8x128xf32>
    %413 = vector.extract_strided_slice %412 {offsets = [0, 0], sizes = [8, 32], strides = [1, 1]} : vector<8x128xf32> to vector<8x32xf32>
    %414 = arith.negf %413 : vector<8x32xf32>
    %415 = math.exp %414 : vector<8x32xf32>
    %cst_100 = arith.constant 1.000000e+00 : f32
    %416 = vector.broadcast %cst_100 : f32 to vector<8x32xf32>
    %417 = arith.addf %416, %415 : vector<8x32xf32>
    %418 = arith.divf %416, %417 : vector<8x32xf32>
    %419 = vector.extract_strided_slice %412 {offsets = [0, 32], sizes = [8, 32], strides = [1, 1]} : vector<8x128xf32> to vector<8x32xf32>
    %420 = arith.negf %419 : vector<8x32xf32>
    %421 = math.exp %420 : vector<8x32xf32>
    %cst_101 = arith.constant 1.000000e+00 : f32
    %422 = vector.broadcast %cst_101 : f32 to vector<8x32xf32>
    %423 = arith.addf %422, %421 : vector<8x32xf32>
    %424 = arith.divf %422, %423 : vector<8x32xf32>
    %425 = vector.extract_strided_slice %412 {offsets = [0, 64], sizes = [8, 32], strides = [1, 1]} : vector<8x128xf32> to vector<8x32xf32>
    %426 = math.tanh %425 : vector<8x32xf32>
    %427 = vector.extract_strided_slice %412 {offsets = [0, 96], sizes = [8, 32], strides = [1, 1]} : vector<8x128xf32> to vector<8x32xf32>
    %428 = arith.negf %427 : vector<8x32xf32>
    %429 = math.exp %428 : vector<8x32xf32>
    %cst_102 = arith.constant 1.000000e+00 : f32
    %430 = vector.broadcast %cst_102 : f32 to vector<8x32xf32>
    %431 = arith.addf %430, %429 : vector<8x32xf32>
    %432 = arith.divf %430, %431 : vector<8x32xf32>
    %433 = arith.mulf %424, %363 : vector<8x32xf32>
    %434 = arith.mulf %418, %426 : vector<8x32xf32>
    %435 = arith.addf %433, %434 : vector<8x32xf32>
    %436 = math.tanh %435 : vector<8x32xf32>
    %437 = arith.mulf %432, %436 : vector<8x32xf32>
    %438 = tpu.concatenate %407, %405, %437, %435 in 1 : vector<8x32xf32>, vector<8x32xf32>, vector<8x32xf32>, vector<8x32xf32> -> vector<8x128xf32>
    %439 = arith.index_cast %c5_i32 : i32 to index
    %c0_103 = arith.constant 0 : index
    %c0_104 = arith.constant 0 : index
    %440 = vector.load %arg6[%439, %c0_103, %c0_104] : memref<8x8x128xf32, #tpu.memory_space<vmem>>, vector<1x8x128xf32>
    %441 = vector.shape_cast %440 : vector<1x8x128xf32> to vector<8x128xf32>
    %442 = vector.shape_cast %438 : vector<8x128xf32> to vector<1x8x128xf32>
    tpu.vector_store %arg6[%439, %c0_103, %c0_104], %442 {strides = array<i32>} : memref<8x8x128xf32, #tpu.memory_space<vmem>>, vector<1x8x128xf32>,
    %c6_i32 = arith.constant 6 : i32
    %443 = arith.index_cast %c6_i32 : i32 to index
    %c0_105 = arith.constant 0 : index
    %c0_106 = arith.constant 0 : index
    %444 = vector.load %arg7[%443, %c0_105, %c0_106] : memref<8x8x256xf32, #tpu.memory_space<vmem>>, vector<1x8x256xf32>
    %445 = vector.shape_cast %444 : vector<1x8x256xf32> to vector<8x256xf32>
    %c7_i32_107 = arith.constant 7 : i32
    %446 = arith.subi %c7_i32_107, %c6_i32 : i32
    %447 = arith.index_cast %446 : i32 to index
    %c0_108 = arith.constant 0 : index
    %c0_109 = arith.constant 0 : index
    %448 = vector.load %arg7[%447, %c0_108, %c0_109] : memref<8x8x256xf32, #tpu.memory_space<vmem>>, vector<1x8x256xf32>
    %449 = vector.shape_cast %448 : vector<1x8x256xf32> to vector<8x256xf32>
    %450 = vector.extract_strided_slice %445 {offsets = [0, 0], sizes = [8, 128], strides = [1, 1]} : vector<8x256xf32> to vector<8x128xf32>
    %cst_110 = arith.constant dense<0.000000e+00> : vector<8x128xf32>
    %451 = tpu.matmul %407, %6, %cst_110 {dimension_numbers = #tpu.dot_dimension_numbers<[1], [0], [0], [1], [0, 0, 1, 1], [], []>} : vector<8x32xf32>, vector<32x128xf32>, vector<8x128xf32> -> vector<8x128xf32>
    %452 = arith.addf %450, %451 : vector<8x128xf32>
    %453 = vector.broadcast %8 : vector<1x128xf32> to vector<8x128xf32>
    %454 = arith.addf %452, %453 : vector<8x128xf32>
    %455 = vector.extract_strided_slice %454 {offsets = [0, 0], sizes = [8, 32], strides = [1, 1]} : vector<8x128xf32> to vector<8x32xf32>
    %456 = arith.negf %455 : vector<8x32xf32>
    %457 = math.exp %456 : vector<8x32xf32>
    %cst_111 = arith.constant 1.000000e+00 : f32
    %458 = vector.broadcast %cst_111 : f32 to vector<8x32xf32>
    %459 = arith.addf %458, %457 : vector<8x32xf32>
    %460 = arith.divf %458, %459 : vector<8x32xf32>
    %461 = vector.extract_strided_slice %454 {offsets = [0, 32], sizes = [8, 32], strides = [1, 1]} : vector<8x128xf32> to vector<8x32xf32>
    %462 = arith.negf %461 : vector<8x32xf32>
    %463 = math.exp %462 : vector<8x32xf32>
    %cst_112 = arith.constant 1.000000e+00 : f32
    %464 = vector.broadcast %cst_112 : f32 to vector<8x32xf32>
    %465 = arith.addf %464, %463 : vector<8x32xf32>
    %466 = arith.divf %464, %465 : vector<8x32xf32>
    %467 = vector.extract_strided_slice %454 {offsets = [0, 64], sizes = [8, 32], strides = [1, 1]} : vector<8x128xf32> to vector<8x32xf32>
    %468 = math.tanh %467 : vector<8x32xf32>
    %469 = vector.extract_strided_slice %454 {offsets = [0, 96], sizes = [8, 32], strides = [1, 1]} : vector<8x128xf32> to vector<8x32xf32>
    %470 = arith.negf %469 : vector<8x32xf32>
    %471 = math.exp %470 : vector<8x32xf32>
    %cst_113 = arith.constant 1.000000e+00 : f32
    %472 = vector.broadcast %cst_113 : f32 to vector<8x32xf32>
    %473 = arith.addf %472, %471 : vector<8x32xf32>
    %474 = arith.divf %472, %473 : vector<8x32xf32>
    %475 = arith.mulf %466, %405 : vector<8x32xf32>
    %476 = arith.mulf %460, %468 : vector<8x32xf32>
    %477 = arith.addf %475, %476 : vector<8x32xf32>
    %478 = math.tanh %477 : vector<8x32xf32>
    %479 = arith.mulf %474, %478 : vector<8x32xf32>
    %480 = vector.extract_strided_slice %449 {offsets = [0, 128], sizes = [8, 128], strides = [1, 1]} : vector<8x256xf32> to vector<8x128xf32>
    %cst_114 = arith.constant dense<0.000000e+00> : vector<8x128xf32>
    %481 = tpu.matmul %437, %7, %cst_114 {dimension_numbers = #tpu.dot_dimension_numbers<[1], [0], [0], [1], [0, 0, 1, 1], [], []>} : vector<8x32xf32>, vector<32x128xf32>, vector<8x128xf32> -> vector<8x128xf32>
    %482 = arith.addf %480, %481 : vector<8x128xf32>
    %483 = vector.broadcast %9 : vector<1x128xf32> to vector<8x128xf32>
    %484 = arith.addf %482, %483 : vector<8x128xf32>
    %485 = vector.extract_strided_slice %484 {offsets = [0, 0], sizes = [8, 32], strides = [1, 1]} : vector<8x128xf32> to vector<8x32xf32>
    %486 = arith.negf %485 : vector<8x32xf32>
    %487 = math.exp %486 : vector<8x32xf32>
    %cst_115 = arith.constant 1.000000e+00 : f32
    %488 = vector.broadcast %cst_115 : f32 to vector<8x32xf32>
    %489 = arith.addf %488, %487 : vector<8x32xf32>
    %490 = arith.divf %488, %489 : vector<8x32xf32>
    %491 = vector.extract_strided_slice %484 {offsets = [0, 32], sizes = [8, 32], strides = [1, 1]} : vector<8x128xf32> to vector<8x32xf32>
    %492 = arith.negf %491 : vector<8x32xf32>
    %493 = math.exp %492 : vector<8x32xf32>
    %cst_116 = arith.constant 1.000000e+00 : f32
    %494 = vector.broadcast %cst_116 : f32 to vector<8x32xf32>
    %495 = arith.addf %494, %493 : vector<8x32xf32>
    %496 = arith.divf %494, %495 : vector<8x32xf32>
    %497 = vector.extract_strided_slice %484 {offsets = [0, 64], sizes = [8, 32], strides = [1, 1]} : vector<8x128xf32> to vector<8x32xf32>
    %498 = math.tanh %497 : vector<8x32xf32>
    %499 = vector.extract_strided_slice %484 {offsets = [0, 96], sizes = [8, 32], strides = [1, 1]} : vector<8x128xf32> to vector<8x32xf32>
    %500 = arith.negf %499 : vector<8x32xf32>
    %501 = math.exp %500 : vector<8x32xf32>
    %cst_117 = arith.constant 1.000000e+00 : f32
    %502 = vector.broadcast %cst_117 : f32 to vector<8x32xf32>
    %503 = arith.addf %502, %501 : vector<8x32xf32>
    %504 = arith.divf %502, %503 : vector<8x32xf32>
    %505 = arith.mulf %496, %435 : vector<8x32xf32>
    %506 = arith.mulf %490, %498 : vector<8x32xf32>
    %507 = arith.addf %505, %506 : vector<8x32xf32>
    %508 = math.tanh %507 : vector<8x32xf32>
    %509 = arith.mulf %504, %508 : vector<8x32xf32>
    %510 = tpu.concatenate %479, %477, %509, %507 in 1 : vector<8x32xf32>, vector<8x32xf32>, vector<8x32xf32>, vector<8x32xf32> -> vector<8x128xf32>
    %511 = arith.index_cast %c6_i32 : i32 to index
    %c0_118 = arith.constant 0 : index
    %c0_119 = arith.constant 0 : index
    %512 = vector.load %arg6[%511, %c0_118, %c0_119] : memref<8x8x128xf32, #tpu.memory_space<vmem>>, vector<1x8x128xf32>
    %513 = vector.shape_cast %512 : vector<1x8x128xf32> to vector<8x128xf32>
    %514 = vector.shape_cast %510 : vector<8x128xf32> to vector<1x8x128xf32>
    tpu.vector_store %arg6[%511, %c0_118, %c0_119], %514 {strides = array<i32>} : memref<8x8x128xf32, #tpu.memory_space<vmem>>, vector<1x8x128xf32>,
    %c7_i32_120 = arith.constant 7 : i32
    %515 = arith.index_cast %c7_i32_120 : i32 to index
    %c0_121 = arith.constant 0 : index
    %c0_122 = arith.constant 0 : index
    %516 = vector.load %arg7[%515, %c0_121, %c0_122] : memref<8x8x256xf32, #tpu.memory_space<vmem>>, vector<1x8x256xf32>
    %517 = vector.shape_cast %516 : vector<1x8x256xf32> to vector<8x256xf32>
    %c7_i32_123 = arith.constant 7 : i32
    %518 = arith.subi %c7_i32_123, %c7_i32_120 : i32
    %519 = arith.index_cast %518 : i32 to index
    %c0_124 = arith.constant 0 : index
    %c0_125 = arith.constant 0 : index
    %520 = vector.load %arg7[%519, %c0_124, %c0_125] : memref<8x8x256xf32, #tpu.memory_space<vmem>>, vector<1x8x256xf32>
    %521 = vector.shape_cast %520 : vector<1x8x256xf32> to vector<8x256xf32>
    %522 = vector.extract_strided_slice %517 {offsets = [0, 0], sizes = [8, 128], strides = [1, 1]} : vector<8x256xf32> to vector<8x128xf32>
    %cst_126 = arith.constant dense<0.000000e+00> : vector<8x128xf32>
    %523 = tpu.matmul %479, %6, %cst_126 {dimension_numbers = #tpu.dot_dimension_numbers<[1], [0], [0], [1], [0, 0, 1, 1], [], []>} : vector<8x32xf32>, vector<32x128xf32>, vector<8x128xf32> -> vector<8x128xf32>
    %524 = arith.addf %522, %523 : vector<8x128xf32>
    %525 = vector.broadcast %8 : vector<1x128xf32> to vector<8x128xf32>
    %526 = arith.addf %524, %525 : vector<8x128xf32>
    %527 = vector.extract_strided_slice %526 {offsets = [0, 0], sizes = [8, 32], strides = [1, 1]} : vector<8x128xf32> to vector<8x32xf32>
    %528 = arith.negf %527 : vector<8x32xf32>
    %529 = math.exp %528 : vector<8x32xf32>
    %cst_127 = arith.constant 1.000000e+00 : f32
    %530 = vector.broadcast %cst_127 : f32 to vector<8x32xf32>
    %531 = arith.addf %530, %529 : vector<8x32xf32>
    %532 = arith.divf %530, %531 : vector<8x32xf32>
    %533 = vector.extract_strided_slice %526 {offsets = [0, 32], sizes = [8, 32], strides = [1, 1]} : vector<8x128xf32> to vector<8x32xf32>
    %534 = arith.negf %533 : vector<8x32xf32>
    %535 = math.exp %534 : vector<8x32xf32>
    %cst_128 = arith.constant 1.000000e+00 : f32
    %536 = vector.broadcast %cst_128 : f32 to vector<8x32xf32>
    %537 = arith.addf %536, %535 : vector<8x32xf32>
    %538 = arith.divf %536, %537 : vector<8x32xf32>
    %539 = vector.extract_strided_slice %526 {offsets = [0, 64], sizes = [8, 32], strides = [1, 1]} : vector<8x128xf32> to vector<8x32xf32>
    %540 = math.tanh %539 : vector<8x32xf32>
    %541 = vector.extract_strided_slice %526 {offsets = [0, 96], sizes = [8, 32], strides = [1, 1]} : vector<8x128xf32> to vector<8x32xf32>
    %542 = arith.negf %541 : vector<8x32xf32>
    %543 = math.exp %542 : vector<8x32xf32>
    %cst_129 = arith.constant 1.000000e+00 : f32
    %544 = vector.broadcast %cst_129 : f32 to vector<8x32xf32>
    %545 = arith.addf %544, %543 : vector<8x32xf32>
    %546 = arith.divf %544, %545 : vector<8x32xf32>
    %547 = arith.mulf %538, %477 : vector<8x32xf32>
    %548 = arith.mulf %532, %540 : vector<8x32xf32>
    %549 = arith.addf %547, %548 : vector<8x32xf32>
    %550 = math.tanh %549 : vector<8x32xf32>
    %551 = arith.mulf %546, %550 : vector<8x32xf32>
    %552 = vector.extract_strided_slice %521 {offsets = [0, 128], sizes = [8, 128], strides = [1, 1]} : vector<8x256xf32> to vector<8x128xf32>
    %cst_130 = arith.constant dense<0.000000e+00> : vector<8x128xf32>
    %553 = tpu.matmul %509, %7, %cst_130 {dimension_numbers = #tpu.dot_dimension_numbers<[1], [0], [0], [1], [0, 0, 1, 1], [], []>} : vector<8x32xf32>, vector<32x128xf32>, vector<8x128xf32> -> vector<8x128xf32>
    %554 = arith.addf %552, %553 : vector<8x128xf32>
    %555 = vector.broadcast %9 : vector<1x128xf32> to vector<8x128xf32>
    %556 = arith.addf %554, %555 : vector<8x128xf32>
    %557 = vector.extract_strided_slice %556 {offsets = [0, 0], sizes = [8, 32], strides = [1, 1]} : vector<8x128xf32> to vector<8x32xf32>
    %558 = arith.negf %557 : vector<8x32xf32>
    %559 = math.exp %558 : vector<8x32xf32>
    %cst_131 = arith.constant 1.000000e+00 : f32
    %560 = vector.broadcast %cst_131 : f32 to vector<8x32xf32>
    %561 = arith.addf %560, %559 : vector<8x32xf32>
    %562 = arith.divf %560, %561 : vector<8x32xf32>
    %563 = vector.extract_strided_slice %556 {offsets = [0, 32], sizes = [8, 32], strides = [1, 1]} : vector<8x128xf32> to vector<8x32xf32>
    %564 = arith.negf %563 : vector<8x32xf32>
    %565 = math.exp %564 : vector<8x32xf32>
    %cst_132 = arith.constant 1.000000e+00 : f32
    %566 = vector.broadcast %cst_132 : f32 to vector<8x32xf32>
    %567 = arith.addf %566, %565 : vector<8x32xf32>
    %568 = arith.divf %566, %567 : vector<8x32xf32>
    %569 = vector.extract_strided_slice %556 {offsets = [0, 64], sizes = [8, 32], strides = [1, 1]} : vector<8x128xf32> to vector<8x32xf32>
    %570 = math.tanh %569 : vector<8x32xf32>
    %571 = vector.extract_strided_slice %556 {offsets = [0, 96], sizes = [8, 32], strides = [1, 1]} : vector<8x128xf32> to vector<8x32xf32>
    %572 = arith.negf %571 : vector<8x32xf32>
    %573 = math.exp %572 : vector<8x32xf32>
    %cst_133 = arith.constant 1.000000e+00 : f32
    %574 = vector.broadcast %cst_133 : f32 to vector<8x32xf32>
    %575 = arith.addf %574, %573 : vector<8x32xf32>
    %576 = arith.divf %574, %575 : vector<8x32xf32>
    %577 = arith.mulf %568, %507 : vector<8x32xf32>
    %578 = arith.mulf %562, %570 : vector<8x32xf32>
    %579 = arith.addf %577, %578 : vector<8x32xf32>
    %580 = math.tanh %579 : vector<8x32xf32>
    %581 = arith.mulf %576, %580 : vector<8x32xf32>
    %582 = tpu.concatenate %551, %549, %581, %579 in 1 : vector<8x32xf32>, vector<8x32xf32>, vector<8x32xf32>, vector<8x32xf32> -> vector<8x128xf32>
    %583 = arith.index_cast %c7_i32_120 : i32 to index
    %c0_134 = arith.constant 0 : index
    %c0_135 = arith.constant 0 : index
    %584 = vector.load %arg6[%583, %c0_134, %c0_135] : memref<8x8x128xf32, #tpu.memory_space<vmem>>, vector<1x8x128xf32>
    %585 = vector.shape_cast %584 : vector<1x8x128xf32> to vector<8x128xf32>
    %586 = vector.shape_cast %582 : vector<8x128xf32> to vector<1x8x128xf32>
    tpu.vector_store %arg6[%583, %c0_134, %c0_135], %586 {strides = array<i32>} : memref<8x8x128xf32, #tpu.memory_space<vmem>>, vector<1x8x128xf32>,
    %c8_i32 = arith.constant 8 : i32
    return
  }
}

</mosaic_0001>

<llo_original>
// kernel: tpu_custom_call.1
$region0: #{tpu_custom_call.1}
  #allocation0 [shape = 'u32[]', space=smem, size = 0x4, offset = 0x4, fixed_abs, tag = 'smem constant byte address 0x4 - core index']
  #allocation1 [shape = 'u32[144,128]{1,0:T(1,128)}', space=vmem, size = 0x12000, scoped, tag = 'internal scratch']
  #allocation2 [shape = 'f32[8,8,256]{2,1,0:T(8,128)}', space=vmem, size = 0x10000, scoped, tag = 'scratch operand']
  %s0 = inlined_call_operand.hbm [shape: f32[8,8,32], index: 0, kind: input, shape index: {}]
  %s1 = inlined_call_operand.hbm [shape: f32[32,256], index: 1, kind: input, shape index: {}]
  %s2 = inlined_call_operand.hbm [shape: f32[32,128], index: 2, kind: input, shape index: {}]
  %s3 = inlined_call_operand.hbm [shape: f32[32,128], index: 3, kind: input, shape index: {}]
  %s4 = inlined_call_operand.vmem [shape: f32[1,128], index: 4, kind: input, shape index: {}]
  %s5 = inlined_call_operand.vmem [shape: f32[1,128], index: 5, kind: input, shape index: {}]
  %s6 = inlined_call_operand.hbm [shape: f32[8,8,128], index: 6, kind: output, shape index: {}]
  %s7 = sld [smem:[#allocation0]]
  $region50: #{tpu_custom_call.1} parent=0
    _
  %s9 = ssub.s32 1, %s7
  %s10 = scalar_select 0, %s9, %s7
  $region1: #{tpu_custom_call.1} parent=0
    #allocation3 [shape = 'u8[32768]{0}', space=vmem, size = 0x8000, scoped, tag = 'input window, operand 0, single buffered']
    #allocation4 [shape = 's32[1]{0}', space=sflag, size = 0x4, scoped, tag = 'scoped memory for tpu_custom_call.1']
    #allocation5 [shape = 's32[1]{0}', space=sflag, size = 0x4, scoped, tag = 'scoped memory for tpu_custom_call.1']
    #allocation6 [shape = 'u8[32768]{0}', space=vmem, size = 0x8000, scoped, tag = 'input window, operand 1, single buffered']
    #allocation7 [shape = 's32[1]{0}', space=sflag, size = 0x4, scoped, tag = 'scoped memory for tpu_custom_call.1']
    #allocation8 [shape = 'u8[16384]{0}', space=vmem, size = 0x4000, scoped, tag = 'input window, operand 2, single buffered']
    #allocation9 [shape = 'u8[16384]{0}', space=vmem, size = 0x4000, scoped, tag = 'input window, operand 3, single buffered']
    #allocation10 [shape = 's32[1]{0}', space=sflag, size = 0x4, scoped, tag = 'scoped memory for tpu_custom_call.1']
    #allocation11 [shape = 'u8[32768]{0}', space=vmem, size = 0x8000, scoped, tag = 'output window, operand 0, single buffered']
    %11 = vsyncpa [#allocation4], 0
    %12 = vsyncpa [#allocation7], 0
    %13 = vsyncpa [#allocation10], 0
    %14 = vsyncpa [#allocation5], 0
    // Predicated region
    $region2: #{tpu_custom_call.1} parent=1 // pred_check
      _
    $region3: #{tpu_custom_call.1} parent=1 // pred_check_branch
      %16 = sbr.rel (0) target = $region5
    $region4: #{tpu_custom_call.1} parent=1 // pred_region
      %s18 = ssub.s32 1024, 1024
      %19 = vsyncadd [#allocation4], %s18
      %s20 = sshll.u32 [#allocation3], 4
      %s21 = int_to_ptr.vmem [resolvable:$true] %s20
      %26 = dma.hbm_to_vmem [thread:$0]  %s0, 1024, %s21, [#allocation4], 128, 128, 8
    $region5: #{tpu_custom_call.1} parent=1 // pred_fallthru
      _
    // Predicated region
    $region6: #{tpu_custom_call.1} parent=1 // pred_check
      _
    $region7: #{tpu_custom_call.1} parent=1 // pred_check_branch
      %28 = sbr.rel (0) target = $region9
    $region8: #{tpu_custom_call.1} parent=1 // pred_region
      %s30 = ssub.s32 1024, 1024
      %31 = vsyncadd [#allocation7], %s30
      %s32 = sshll.u32 [#allocation6], 4
      %s33 = int_to_ptr.vmem [resolvable:$true] %s32
      %38 = dma.hbm_to_vmem [thread:$0]  %s1, 1024, %s33, [#allocation7], 256, 256, 16
    $region9: #{tpu_custom_call.1} parent=1 // pred_fallthru
      _
    // Predicated region
    $region10: #{tpu_custom_call.1} parent=1 // pred_check
      _
    $region11: #{tpu_custom_call.1} parent=1 // pred_check_branch
      %40 = sbr.rel (0) target = $region13
    $region12: #{tpu_custom_call.1} parent=1 // pred_region
      %s42 = ssub.s32 512, 512
      %43 = vsyncadd [#allocation7], %s42
      %s44 = sshll.u32 [#allocation8], 4
      %s45 = int_to_ptr.vmem [resolvable:$true] %s44
      %50 = dma.hbm_to_vmem [thread:$0]  %s2, 512, %s45, [#allocation7], 128, 128, 8
    $region13: #{tpu_custom_call.1} parent=1 // pred_fallthru
      _
    // Predicated region
    $region14: #{tpu_custom_call.1} parent=1 // pred_check
      _
    $region15: #{tpu_custom_call.1} parent=1 // pred_check_branch
      %52 = sbr.rel (0) target = $region17
    $region16: #{tpu_custom_call.1} parent=1 // pred_region
      %s54 = ssub.s32 512, 512
      %55 = vsyncadd [#allocation10], %s54
      %s56 = sshll.u32 [#allocation9], 4
      %s57 = int_to_ptr.vmem [resolvable:$true] %s56
      %62 = dma.hbm_to_vmem [thread:$0]  %s3, 512, %s57, [#allocation10], 128, 128, 8
    $region17: #{tpu_custom_call.1} parent=1 // pred_fallthru
      _
    // Predicated region
    $region18: #{tpu_custom_call.1} parent=1 // pred_check
      _
    $region19: #{tpu_custom_call.1} parent=1 // pred_check_branch
      %64 = sbr.rel (0) target = $region21
    $region20: #{tpu_custom_call.1} parent=1 // pred_region
      _
    $region21: #{tpu_custom_call.1} parent=1 // pred_fallthru
      _
    // Predicated region
    $region22: #{tpu_custom_call.1} parent=1 // pred_check
      _
    $region23: #{tpu_custom_call.1} parent=1 // pred_check_branch
      %66 = sbr.rel (0) target = $region25
    $region24: #{tpu_custom_call.1} parent=1 // pred_region
      _
    $region25: #{tpu_custom_call.1} parent=1 // pred_fallthru
      _
    // Predicated region
    $region26: #{tpu_custom_call.1} parent=1 // pred_check
      _
    $region27: #{tpu_custom_call.1} parent=1 // pred_check_branch
      %68 = sbr.rel (0) target = $region29
    $region28: #{tpu_custom_call.1} parent=1 // pred_region
      %69 = dma.done [#allocation4], 1024
    $region29: #{tpu_custom_call.1} parent=1 // pred_fallthru
      _
    // Predicated region
    $region30: #{tpu_custom_call.1} parent=1 // pred_check
      _
    $region31: #{tpu_custom_call.1} parent=1 // pred_check_branch
      %71 = sbr.rel (0) target = $region33
    $region32: #{tpu_custom_call.1} parent=1 // pred_region
      %72 = dma.done [#allocation7], 1024
    $region33: #{tpu_custom_call.1} parent=1 // pred_fallthru
      _
    // Predicated region
    $region34: #{tpu_custom_call.1} parent=1 // pred_check
      _
    $region35: #{tpu_custom_call.1} parent=1 // pred_check_branch
      %74 = sbr.rel (0) target = $region37
    $region36: #{tpu_custom_call.1} parent=1 // pred_region
      %75 = dma.done [#allocation7], 512
    $region37: #{tpu_custom_call.1} parent=1 // pred_fallthru
      _
    // Predicated region
    $region38: #{tpu_custom_call.1} parent=1 // pred_check
      _
    $region39: #{tpu_custom_call.1} parent=1 // pred_check_branch
      %77 = sbr.rel (0) target = $region41
    $region40: #{tpu_custom_call.1} parent=1 // pred_region
      %78 = dma.done [#allocation10], 512
    $region41: #{tpu_custom_call.1} parent=1 // pred_fallthru
      _
    %v79 = vld [vmem:[#allocation3] sm:$0xff]
    %v80 = vld [vmem:[#allocation3 + $0x8] sm:$0xff]
    %v81 = vld [vmem:[#allocation3 + $0x10] sm:$0xff]
    %v82 = vld [vmem:[#allocation3 + $0x18] sm:$0xff]
    %v83 = vld [vmem:[#allocation3 + $0x20] sm:$0xff]
    %v84 = vld [vmem:[#allocation3 + $0x28] sm:$0xff]
    %v85 = vld [vmem:[#allocation3 + $0x30] sm:$0xff]
    %v86 = vld [vmem:[#allocation3 + $0x38] sm:$0xff]
    %v87 = vld [vmem:[#allocation6] sm:$0xff]
    %v88 = vld [vmem:[#allocation6 + $0x8] sm:$0xff]
    %v89 = vld [vmem:[#allocation6 + $0x10] sm:$0xff]
    %v90 = vld [vmem:[#allocation6 + $0x18] sm:$0xff]
    %v91 = vld [vmem:[#allocation6 + $0x20] sm:$0xff]
    %v92 = vld [vmem:[#allocation6 + $0x28] sm:$0xff]
    %v93 = vld [vmem:[#allocation6 + $0x30] sm:$0xff]
    %v94 = vld [vmem:[#allocation6 + $0x38] sm:$0xff]
    %vm95 = vcmask 261120
    %v97 = vsel %vm95, %v79, 0
    %v100 = vsel %vm95, %v80, 0
    %v103 = vsel %vm95, %v81, 0
    %v106 = vsel %vm95, %v82, 0
    %v109 = vsel %vm95, %v83, 0
    %v112 = vsel %vm95, %v84, 0
    %v115 = vsel %vm95, %v85, 0
    %v118 = vsel %vm95, %v86, 0
    %120 = vmatprep.subr.mxu0 %v88
    %121 = vmatpush1.msra.mxu0 %v87
    %122 = vmatprep.subr.mxu0 %v90
    %123 = vmatpush1.msra.mxu0 %v89
    %124 = vmatprep.subr.mxu0 %v92
    %125 = vmatpush1.msra.mxu0 %v91
    %126 = vmatprep.subr.mxu0 %v94
    %127 = vmatpush1.msra.mxu0 %v93
    %128 = vmatprep.subr.mxu0 0.0
    %129 = vmatpush1.msra.mxu0 0.0
    %130 = vmatprep.subr.mxu0 0.0
    %131 = vmatpush1.msra.mxu0 0.0
    %132 = vmatprep.subr.mxu0 0.0
    %133 = vmatpush1.msra.mxu0 0.0
    %134 = vmatprep.subr.mxu0 0.0
    %135 = vmatpush1.msra.mxu0 0.0
    %136 = vmatprep.subr.mxu0 0.0
    %137 = vmatpush1.msra.mxu0 0.0
    %138 = vmatprep.subr.mxu0 0.0
    %139 = vmatpush1.msra.mxu0 0.0
    %140 = vmatprep.subr.mxu0 0.0
    %141 = vmatpush1.msra.mxu0 0.0
    %142 = vmatprep.subr.mxu0 0.0
    %143 = vmatpush1.msra.mxu0 0.0
    %144 = vmatprep.subr.mxu0 0.0
    %145 = vmatpush1.msra.mxu0 0.0
    %146 = vmatprep.subr.mxu0 0.0
    %147 = vmatpush1.msra.mxu0 0.0
    %148 = vmatprep.subr.mxu0 0.0
    %149 = vmatpush1.msra.mxu0 0.0
    %150 = vmatprep.subr.mxu0 0.0
    %151 = vmatpush1.msra.mxu0 0.0
    %152 = vmatprep.subr.mxu0 0.0
    %153 = vmatpush1.msra.mxu0 0.0
    %154 = vmatprep.subr.mxu0 0.0
    %155 = vmatpush1.msra.mxu0 0.0
    %156 = vmatprep.subr.mxu0 0.0
    %157 = vmatpush1.msra.mxu0 0.0
    %158 = vmatprep.subr.mxu0 0.0
    %159 = vmatpush1.msra.mxu0 0.0
    %160 = vmatprep.subr.mxu0 0.0
    %161 = vmatpush1.msra.mxu0 0.0
    %162 = vmatprep.subr.mxu0 0.0
    %163 = vmatpush1.msra.mxu0 0.0
    %164 = vmatprep.subr.mxu0 0.0
    %165 = vmatpush1.msra.mxu0 0.0
    %166 = vmatprep.subr.mxu0 0.0
    %167 = vmatpush1.msra.mxu0 0.0
    %168 = vmatprep.subr.mxu0 0.0
    %169 = vmatpush1.msra.mxu0 0.0
    %170 = vmatprep.subr.mxu0 0.0
    %171 = vmatpush1.msra.mxu0 0.0
    %172 = vmatprep.subr.mxu0 0.0
    %173 = vmatpush1.msra.mxu0 0.0
    %174 = vmatprep.subr.mxu0 0.0
    %175 = vmatpush1.msra.mxu0 0.0
    %176 = vmatprep.subr.mxu0 0.0
    %177 = vmatpush1.msra.mxu0 0.0
    %178 = vmatprep.subr.mxu0 0.0
    %179 = vmatpush1.msra.mxu0 0.0
    %180 = vmatprep.subr.mxu0 0.0
    %181 = vmatpush1.msra.mxu0 0.0
    %182 = vmatprep.subr.mxu0 0.0
    %183 = vmatpush1.msra.mxu0 0.0
    %184 = vmatprep.mubr.f32.mxu0 0.0
    %185 = vmatmul.mubr.f32.gmra.mrb[0].mxu0 %v97
    %v186 = vpop.f32.mrb[0].mxu0
    %v187 = vadd.f32 0.0, %v186
    %v188 = vpop.f32.mrb[0].mxu0
    %v189 = vadd.f32 0.0, %v188
    %190 = vmatprep.mubr.f32.mxu0 0.0
    %191 = vmatmul.mubr.f32.gmra.mrb[0].mxu0 %v100
    %v192 = vpop.f32.mrb[0].mxu0
    %v193 = vadd.f32 0.0, %v192
    %v194 = vpop.f32.mrb[0].mxu0
    %v195 = vadd.f32 0.0, %v194
    %196 = vmatprep.mubr.f32.mxu0 0.0
    %197 = vmatmul.mubr.f32.gmra.mrb[0].mxu0 %v103
    %v198 = vpop.f32.mrb[0].mxu0
    %v199 = vadd.f32 0.0, %v198
    %v200 = vpop.f32.mrb[0].mxu0
    %v201 = vadd.f32 0.0, %v200
    %202 = vmatprep.mubr.f32.mxu0 0.0
    %203 = vmatmul.mubr.f32.gmra.mrb[0].mxu0 %v106
    %v204 = vpop.f32.mrb[0].mxu0
    %v205 = vadd.f32 0.0, %v204
    %v206 = vpop.f32.mrb[0].mxu0
    %v207 = vadd.f32 0.0, %v206
    %208 = vmatprep.mubr.f32.mxu0 0.0
    %209 = vmatmul.mubr.f32.gmra.mrb[0].mxu0 %v109
    %v210 = vpop.f32.mrb[0].mxu0
    %v211 = vadd.f32 0.0, %v210
    %v212 = vpop.f32.mrb[0].mxu0
    %v213 = vadd.f32 0.0, %v212
    %214 = vmatprep.mubr.f32.mxu0 0.0
    %215 = vmatmul.mubr.f32.gmra.mrb[0].mxu0 %v112
    %v216 = vpop.f32.mrb[0].mxu0
    %v217 = vadd.f32 0.0, %v216
    %v218 = vpop.f32.mrb[0].mxu0
    %v219 = vadd.f32 0.0, %v218
    %220 = vmatprep.mubr.f32.mxu0 0.0
    %221 = vmatmul.mubr.f32.gmra.mrb[0].mxu0 %v115
    %v222 = vpop.f32.mrb[0].mxu0
    %v223 = vadd.f32 0.0, %v222
    %v224 = vpop.f32.mrb[0].mxu0
    %v225 = vadd.f32 0.0, %v224
    %226 = vmatprep.mubr.f32.mxu0 0.0
    %227 = vmatmul.mubr.f32.gmra.mrb[0].mxu0 %v118
    %v228 = vpop.f32.mrb[0].mxu0
    %v229 = vadd.f32 0.0, %v228
    %v230 = vpop.f32.mrb[0].mxu0
    %v231 = vadd.f32 0.0, %v230
    %232 = vdwg.mxu0
    %233 = vst [vmem:[#allocation2] sm:$0xff] %v187
    %234 = vst [vmem:[#allocation2 + $0x8] sm:$0xff] %v189
    %235 = vst [vmem:[#allocation2 + $0x10] sm:$0xff] %v193
    %236 = vst [vmem:[#allocation2 + $0x18] sm:$0xff] %v195
    %237 = vst [vmem:[#allocation2 + $0x20] sm:$0xff] %v199
    %238 = vst [vmem:[#allocation2 + $0x28] sm:$0xff] %v201
    %239 = vst [vmem:[#allocation2 + $0x30] sm:$0xff] %v205
    %240 = vst [vmem:[#allocation2 + $0x38] sm:$0xff] %v207
    %241 = vst [vmem:[#allocation2 + $0x40] sm:$0xff] %v211
    %242 = vst [vmem:[#allocation2 + $0x48] sm:$0xff] %v213
    %243 = vst [vmem:[#allocation2 + $0x50] sm:$0xff] %v217
    %244 = vst [vmem:[#allocation2 + $0x58] sm:$0xff] %v219
    %245 = vst [vmem:[#allocation2 + $0x60] sm:$0xff] %v223
    %246 = vst [vmem:[#allocation2 + $0x68] sm:$0xff] %v225
    %247 = vst [vmem:[#allocation2 + $0x70] sm:$0xff] %v229
    %248 = vst [vmem:[#allocation2 + $0x78] sm:$0xff] %v231
    %v249 = vld [vmem:[#allocation8] sm:$0xff]
    %v250 = vld [vmem:[#allocation8 + $0x8] sm:$0xff]
    %v251 = vld [vmem:[#allocation8 + $0x10] sm:$0xff]
    %v252 = vld [vmem:[#allocation8 + $0x18] sm:$0xff]
    %v253 = vld [vmem:[#allocation9] sm:$0xff]
    %v254 = vld [vmem:[#allocation9 + $0x8] sm:$0xff]
    %v255 = vld [vmem:[#allocation9 + $0x10] sm:$0xff]
    %v256 = vld [vmem:[#allocation9 + $0x18] sm:$0xff]
    %v257 = vld [vmem:[%s4] sm:$0x1]
    %v258 = vld [vmem:[%s5] sm:$0x1]
    %v259 = vld [vmem:[#allocation2] sm:$0xff]
    %s260 = scalar_lea.vmem [#allocation2], 112
    %v261 = vld [vmem:[%s260 + $0x8] sm:$0xff]
    %v263 = vsel %vm95, 0.0, 0
    %265 = vmatprep.subr.mxu0 0.0
    %266 = vmatpush1.msra.mxu0 %v249
    %267 = vmatprep.subr.mxu0 0.0
    %268 = vmatpush1.msra.mxu0 %v250
    %269 = vmatprep.subr.mxu0 0.0
    %270 = vmatpush1.msra.mxu0 %v251
    %271 = vmatprep.subr.mxu0 0.0
    %272 = vmatpush1.msra.mxu0 %v252
    %273 = vmatprep.subr.mxu0 0.0
    %274 = vmatpush1.msra.mxu0 0.0
    %275 = vmatprep.subr.mxu0 0.0
    %276 = vmatpush1.msra.mxu0 0.0
    %277 = vmatprep.subr.mxu0 0.0
    %278 = vmatpush1.msra.mxu0 0.0
    %279 = vmatprep.subr.mxu0 0.0
    %280 = vmatpush1.msra.mxu0 0.0
    %281 = vmatprep.subr.mxu0 0.0
    %282 = vmatpush1.msra.mxu0 0.0
    %283 = vmatprep.subr.mxu0 0.0
    %284 = vmatpush1.msra.mxu0 0.0
    %285 = vmatprep.subr.mxu0 0.0
    %286 = vmatpush1.msra.mxu0 0.0
    %287 = vmatprep.subr.mxu0 0.0
    %288 = vmatpush1.msra.mxu0 0.0
    %289 = vmatprep.subr.mxu0 0.0
    %290 = vmatpush1.msra.mxu0 0.0
    %291 = vmatprep.subr.mxu0 0.0
    %292 = vmatpush1.msra.mxu0 0.0
    %293 = vmatprep.subr.mxu0 0.0
    %294 = vmatpush1.msra.mxu0 0.0
    %295 = vmatprep.subr.mxu0 0.0
    %296 = vmatpush1.msra.mxu0 0.0
    %297 = vmatprep.subr.mxu0 0.0
    %298 = vmatpush1.msra.mxu0 0.0
    %299 = vmatprep.subr.mxu0 0.0
    %300 = vmatpush1.msra.mxu0 0.0
    %301 = vmatprep.subr.mxu0 0.0
    %302 = vmatpush1.msra.mxu0 0.0
    %303 = vmatprep.subr.mxu0 0.0
    %304 = vmatpush1.msra.mxu0 0.0
    %305 = vmatprep.subr.mxu0 0.0
    %306 = vmatpush1.msra.mxu0 0.0
    %307 = vmatprep.subr.mxu0 0.0
    %308 = vmatpush1.msra.mxu0 0.0
    %309 = vmatprep.subr.mxu0 0.0
    %310 = vmatpush1.msra.mxu0 0.0
    %311 = vmatprep.subr.mxu0 0.0
    %312 = vmatpush1.msra.mxu0 0.0
    %313 = vmatprep.subr.mxu0 0.0
    %314 = vmatpush1.msra.mxu0 0.0
    %315 = vmatprep.subr.mxu0 0.0
    %316 = vmatpush1.msra.mxu0 0.0
    %317 = vmatprep.subr.mxu0 0.0
    %318 = vmatpush1.msra.mxu0 0.0
    %319 = vmatprep.subr.mxu0 0.0
    %320 = vmatpush1.msra.mxu0 0.0
    %321 = vmatprep.subr.mxu0 0.0
    %322 = vmatpush1.msra.mxu0 0.0
    %323 = vmatprep.subr.mxu0 0.0
    %324 = vmatpush1.msra.mxu0 0.0
    %325 = vmatprep.subr.mxu0 0.0
    %326 = vmatpush1.msra.mxu0 0.0
    %327 = vmatprep.subr.mxu0 0.0
    %328 = vmatpush1.msra.mxu0 0.0
    %329 = vmatprep.mubr.f32.mxu0 0.0
    %330 = vmatmul.mubr.f32.gmra.mrb[0].mxu0 %v263
    %v331 = vpop.f32.mrb[0].mxu0
    %v332 = vadd.f32 0.0, %v331
    %v333 = vpop.f32.mrb[0].mxu0
    %334 = vdwg.mxu0
    %v335 = vadd.f32 %v259, %v332
    %v337 = vlaneseq
    %v338 = vshrl.u32 %v337, 7
    %v339 = vsub.s32 0, %v338
    %v340 = vrot.slane %v257, %v339
    %v342 = vadd.f32 %v335, %v340
    %v343 = vxor.u32 %v342, 2147483648
    %v344 = vmul.f32 %v343, 1.442695
    %v345 = vpow.pop %v344
    %v346 = vadd.f32 %v345, 1.0
    %v347 = vrcp.pop %v346
    %v348 = vmul.f32 1.0, %v347
    %v349 = vtanh.pop %v342
    %v350 = vmul.f32 %v348, 0.0
    %352 = vrot.lane.b32.xlu0 %v349, 64
    %v353 = vpop.permute.xlu0 %352
    %v355 = vmul.f32 %v348, %v353
    %357 = vrot.lane.b32.xlu0 %v355, 32
    %v358 = vpop.permute.xlu0 %357
    %v360 = vadd.f32 %v350, %v358
    %v361 = vtanh.pop %v360
    %363 = vrot.lane.b32.xlu0 %v361, 64
    %v364 = vpop.permute.xlu0 %363
    %v366 = vmul.f32 %v348, %v364
    %367 = vmatprep.subr.mxu0 0.0
    %368 = vmatpush1.msra.mxu0 %v253
    %369 = vmatprep.subr.mxu0 0.0
    %370 = vmatpush1.msra.mxu0 %v254
    %371 = vmatprep.subr.mxu0 0.0
    %372 = vmatpush1.msra.mxu0 %v255
    %373 = vmatprep.subr.mxu0 0.0
    %374 = vmatpush1.msra.mxu0 %v256
    %375 = vmatprep.subr.mxu0 0.0
    %376 = vmatpush1.msra.mxu0 0.0
    %377 = vmatprep.subr.mxu0 0.0
    %378 = vmatpush1.msra.mxu0 0.0
    %379 = vmatprep.subr.mxu0 0.0
    %380 = vmatpush1.msra.mxu0 0.0
    %381 = vmatprep.subr.mxu0 0.0
    %382 = vmatpush1.msra.mxu0 0.0
    %383 = vmatprep.subr.mxu0 0.0
    %384 = vmatpush1.msra.mxu0 0.0
    %385 = vmatprep.subr.mxu0 0.0
    %386 = vmatpush1.msra.mxu0 0.0
    %387 = vmatprep.subr.mxu0 0.0
    %388 = vmatpush1.msra.mxu0 0.0
    %389 = vmatprep.subr.mxu0 0.0
    %390 = vmatpush1.msra.mxu0 0.0
    %391 = vmatprep.subr.mxu0 0.0
    %392 = vmatpush1.msra.mxu0 0.0
    %393 = vmatprep.subr.mxu0 0.0
    %394 = vmatpush1.msra.mxu0 0.0
    %395 = vmatprep.subr.mxu0 0.0
    %396 = vmatpush1.msra.mxu0 0.0
    %397 = vmatprep.subr.mxu0 0.0
    %398 = vmatpush1.msra.mxu0 0.0
    %399 = vmatprep.subr.mxu0 0.0
    %400 = vmatpush1.msra.mxu0 0.0
    %401 = vmatprep.subr.mxu0 0.0
    %402 = vmatpush1.msra.mxu0 0.0
    %403 = vmatprep.subr.mxu0 0.0
    %404 = vmatpush1.msra.mxu0 0.0
    %405 = vmatprep.subr.mxu0 0.0
    %406 = vmatpush1.msra.mxu0 0.0
    %407 = vmatprep.subr.mxu0 0.0
    %408 = vmatpush1.msra.mxu0 0.0
    %409 = vmatprep.subr.mxu0 0.0
    %410 = vmatpush1.msra.mxu0 0.0
    %411 = vmatprep.subr.mxu0 0.0
    %412 = vmatpush1.msra.mxu0 0.0
    %413 = vmatprep.subr.mxu0 0.0
    %414 = vmatpush1.msra.mxu0 0.0
    %415 = vmatprep.subr.mxu0 0.0
    %416 = vmatpush1.msra.mxu0 0.0
    %417 = vmatprep.subr.mxu0 0.0
    %418 = vmatpush1.msra.mxu0 0.0
    %419 = vmatprep.subr.mxu0 0.0
    %420 = vmatpush1.msra.mxu0 0.0
    %421 = vmatprep.subr.mxu0 0.0
    %422 = vmatpush1.msra.mxu0 0.0
    %423 = vmatprep.subr.mxu0 0.0
    %424 = vmatpush1.msra.mxu0 0.0
    %425 = vmatprep.subr.mxu0 0.0
    %426 = vmatpush1.msra.mxu0 0.0
    %427 = vmatprep.subr.mxu0 0.0
    %428 = vmatpush1.msra.mxu0 0.0
    %429 = vmatprep.subr.mxu0 0.0
    %430 = vmatpush1.msra.mxu0 0.0
    %431 = vmatprep.mubr.f32.mxu0 0.0
    %432 = vmatmul.mubr.f32.gmra.mrb[0].mxu0 %v263
    %v433 = vpop.f32.mrb[0].mxu0
    %v434 = vadd.f32 0.0, %v433
    %v435 = vpop.f32.mrb[0].mxu0
    %436 = vdwg.mxu0
    %v437 = vadd.f32 %v261, %v434
    %v439 = vlaneseq
    %v440 = vshrl.u32 %v439, 7
    %v441 = vsub.s32 0, %v440
    %v442 = vrot.slane %v258, %v441
    %v444 = vadd.f32 %v437, %v442
    %v445 = vxor.u32 %v444, 2147483648
    %v446 = vmul.f32 %v445, 1.442695
    %v447 = vpow.pop %v446
    %v448 = vadd.f32 %v447, 1.0
    %v449 = vrcp.pop %v448
    %v450 = vmul.f32 1.0, %v449
    %v451 = vtanh.pop %v444
    %v452 = vmul.f32 %v450, 0.0
    %454 = vrot.lane.b32.xlu0 %v451, 64
    %v455 = vpop.permute.xlu0 %454
    %v457 = vmul.f32 %v450, %v455
    %459 = vrot.lane.b32.xlu0 %v457, 32
    %v460 = vpop.permute.xlu0 %459
    %v462 = vadd.f32 %v452, %v460
    %v463 = vtanh.pop %v462
    %465 = vrot.lane.b32.xlu0 %v463, 64
    %v466 = vpop.permute.xlu0 %465
    %v468 = vmul.f32 %v450, %v466
    %470 = vrot.lane.b32.xlu0 %v366, 32
    %v471 = vpop.permute.xlu0 %470
    %474 = vrot.lane.b32.xlu0 %v468, 96
    %v475 = vpop.permute.xlu0 %474
    %478 = vrot.lane.b32.xlu0 %v462, 64
    %v479 = vpop.permute.xlu0 %478
    %v481 = vsel %vm95, %v471, %v360
    %vm482 = vcmask 523264
    %v483 = vsel %vm482, %v481, %v475
    %vm484 = vcmask 785408
    %v485 = vsel %vm484, %v483, %v479
    %486 = vst [vmem:[#allocation11] sm:$0xff] %v485
    %s487 = scalar_lea.vmem [#allocation2], 16
    %v488 = vld [vmem:[%s487] sm:$0xff]
    %s489 = scalar_lea.vmem [#allocation2], 96
    %v490 = vld [vmem:[%s489 + $0x8] sm:$0xff]
    %v491 = vsel %vm95, %v471, 0
    %493 = vmatprep.subr.mxu0 0.0
    %494 = vmatpush1.msra.mxu0 %v249
    %495 = vmatprep.subr.mxu0 0.0
    %496 = vmatpush1.msra.mxu0 %v250
    %497 = vmatprep.subr.mxu0 0.0
    %498 = vmatpush1.msra.mxu0 %v251
    %499 = vmatprep.subr.mxu0 0.0
    %500 = vmatpush1.msra.mxu0 %v252
    %501 = vmatprep.subr.mxu0 0.0
    %502 = vmatpush1.msra.mxu0 0.0
    %503 = vmatprep.subr.mxu0 0.0
    %504 = vmatpush1.msra.mxu0 0.0
    %505 = vmatprep.subr.mxu0 0.0
    %506 = vmatpush1.msra.mxu0 0.0
    %507 = vmatprep.subr.mxu0 0.0
    %508 = vmatpush1.msra.mxu0 0.0
    %509 = vmatprep.subr.mxu0 0.0
    %510 = vmatpush1.msra.mxu0 0.0
    %511 = vmatprep.subr.mxu0 0.0
    %512 = vmatpush1.msra.mxu0 0.0
    %513 = vmatprep.subr.mxu0 0.0
    %514 = vmatpush1.msra.mxu0 0.0
    %515 = vmatprep.subr.mxu0 0.0
    %516 = vmatpush1.msra.mxu0 0.0
    %517 = vmatprep.subr.mxu0 0.0
    %518 = vmatpush1.msra.mxu0 0.0
    %519 = vmatprep.subr.mxu0 0.0
    %520 = vmatpush1.msra.mxu0 0.0
    %521 = vmatprep.subr.mxu0 0.0
    %522 = vmatpush1.msra.mxu0 0.0
    %523 = vmatprep.subr.mxu0 0.0
    %524 = vmatpush1.msra.mxu0 0.0
    %525 = vmatprep.subr.mxu0 0.0
    %526 = vmatpush1.msra.mxu0 0.0
    %527 = vmatprep.subr.mxu0 0.0
    %528 = vmatpush1.msra.mxu0 0.0
    %529 = vmatprep.subr.mxu0 0.0
    %530 = vmatpush1.msra.mxu0 0.0
    %531 = vmatprep.subr.mxu0 0.0
    %532 = vmatpush1.msra.mxu0 0.0
    %533 = vmatprep.subr.mxu0 0.0
    %534 = vmatpush1.msra.mxu0 0.0
    %535 = vmatprep.subr.mxu0 0.0
    %536 = vmatpush1.msra.mxu0 0.0
    %537 = vmatprep.subr.mxu0 0.0
    %538 = vmatpush1.msra.mxu0 0.0
    %539 = vmatprep.subr.mxu0 0.0
    %540 = vmatpush1.msra.mxu0 0.0
    %541 = vmatprep.subr.mxu0 0.0
    %542 = vmatpush1.msra.mxu0 0.0
    %543 = vmatprep.subr.mxu0 0.0
    %544 = vmatpush1.msra.mxu0 0.0
    %545 = vmatprep.subr.mxu0 0.0
    %546 = vmatpush1.msra.mxu0 0.0
    %547 = vmatprep.subr.mxu0 0.0
    %548 = vmatpush1.msra.mxu0 0.0
    %549 = vmatprep.subr.mxu0 0.0
    %550 = vmatpush1.msra.mxu0 0.0
    %551 = vmatprep.subr.mxu0 0.0
    %552 = vmatpush1.msra.mxu0 0.0
    %553 = vmatprep.subr.mxu0 0.0
    %554 = vmatpush1.msra.mxu0 0.0
    %555 = vmatprep.subr.mxu0 0.0
    %556 = vmatpush1.msra.mxu0 0.0
    %557 = vmatprep.mubr.f32.mxu0 0.0
    %558 = vmatmul.mubr.f32.gmra.mrb[0].mxu0 %v491
    %v559 = vpop.f32.mrb[0].mxu0
    %v560 = vadd.f32 0.0, %v559
    %v561 = vpop.f32.mrb[0].mxu0
    %562 = vdwg.mxu0
    %v563 = vadd.f32 %v488, %v560
    %v564 = vadd.f32 %v563, %v340
    %v565 = vxor.u32 %v564, 2147483648
    %v566 = vmul.f32 %v565, 1.442695
    %v567 = vpow.pop %v566
    %v568 = vadd.f32 %v567, 1.0
    %v569 = vrcp.pop %v568
    %v570 = vmul.f32 1.0, %v569
    %v571 = vtanh.pop %v564
    %v572 = vmul.f32 %v570, %v360
    %574 = vrot.lane.b32.xlu0 %v571, 64
    %v575 = vpop.permute.xlu0 %574
    %v577 = vmul.f32 %v570, %v575
    %579 = vrot.lane.b32.xlu0 %v577, 32
    %v580 = vpop.permute.xlu0 %579
    %v582 = vadd.f32 %v572, %v580
    %v583 = vtanh.pop %v582
    %585 = vrot.lane.b32.xlu0 %v583, 64
    %v586 = vpop.permute.xlu0 %585
    %v588 = vmul.f32 %v570, %v586
    %589 = vrot.lane.b32.xlu0 %v468, 32
    %v590 = vpop.permute.xlu0 %589
    %v591 = vsel %vm95, %v590, 0
    %593 = vmatprep.subr.mxu0 0.0
    %594 = vmatpush1.msra.mxu0 %v253
    %595 = vmatprep.subr.mxu0 0.0
    %596 = vmatpush1.msra.mxu0 %v254
    %597 = vmatprep.subr.mxu0 0.0
    %598 = vmatpush1.msra.mxu0 %v255
    %599 = vmatprep.subr.mxu0 0.0
    %600 = vmatpush1.msra.mxu0 %v256
    %601 = vmatprep.subr.mxu0 0.0
    %602 = vmatpush1.msra.mxu0 0.0
    %603 = vmatprep.subr.mxu0 0.0
    %604 = vmatpush1.msra.mxu0 0.0
    %605 = vmatprep.subr.mxu0 0.0
    %606 = vmatpush1.msra.mxu0 0.0
    %607 = vmatprep.subr.mxu0 0.0
    %608 = vmatpush1.msra.mxu0 0.0
    %609 = vmatprep.subr.mxu0 0.0
    %610 = vmatpush1.msra.mxu0 0.0
    %611 = vmatprep.subr.mxu0 0.0
    %612 = vmatpush1.msra.mxu0 0.0
    %613 = vmatprep.subr.mxu0 0.0
    %614 = vmatpush1.msra.mxu0 0.0
    %615 = vmatprep.subr.mxu0 0.0
    %616 = vmatpush1.msra.mxu0 0.0
    %617 = vmatprep.subr.mxu0 0.0
    %618 = vmatpush1.msra.mxu0 0.0
    %619 = vmatprep.subr.mxu0 0.0
    %620 = vmatpush1.msra.mxu0 0.0
    %621 = vmatprep.subr.mxu0 0.0
    %622 = vmatpush1.msra.mxu0 0.0
    %623 = vmatprep.subr.mxu0 0.0
    %624 = vmatpush1.msra.mxu0 0.0
    %625 = vmatprep.subr.mxu0 0.0
    %626 = vmatpush1.msra.mxu0 0.0
    %627 = vmatprep.subr.mxu0 0.0
    %628 = vmatpush1.msra.mxu0 0.0
    %629 = vmatprep.subr.mxu0 0.0
    %630 = vmatpush1.msra.mxu0 0.0
    %631 = vmatprep.subr.mxu0 0.0
    %632 = vmatpush1.msra.mxu0 0.0
    %633 = vmatprep.subr.mxu0 0.0
    %634 = vmatpush1.msra.mxu0 0.0
    %635 = vmatprep.subr.mxu0 0.0
    %636 = vmatpush1.msra.mxu0 0.0
    %637 = vmatprep.subr.mxu0 0.0
    %638 = vmatpush1.msra.mxu0 0.0
    %639 = vmatprep.subr.mxu0 0.0
    %640 = vmatpush1.msra.mxu0 0.0
    %641 = vmatprep.subr.mxu0 0.0
    %642 = vmatpush1.msra.mxu0 0.0
    %643 = vmatprep.subr.mxu0 0.0
    %644 = vmatpush1.msra.mxu0 0.0
    %645 = vmatprep.subr.mxu0 0.0
    %646 = vmatpush1.msra.mxu0 0.0
    %647 = vmatprep.subr.mxu0 0.0
    %648 = vmatpush1.msra.mxu0 0.0
    %649 = vmatprep.subr.mxu0 0.0
    %650 = vmatpush1.msra.mxu0 0.0
    %651 = vmatprep.subr.mxu0 0.0
    %652 = vmatpush1.msra.mxu0 0.0
    %653 = vmatprep.subr.mxu0 0.0
    %654 = vmatpush1.msra.mxu0 0.0
    %655 = vmatprep.subr.mxu0 0.0
    %656 = vmatpush1.msra.mxu0 0.0
    %657 = vmatprep.mubr.f32.mxu0 0.0
    %658 = vmatmul.mubr.f32.gmra.mrb[0].mxu0 %v591
    %v659 = vpop.f32.mrb[0].mxu0
    %v660 = vadd.f32 0.0, %v659
    %v661 = vpop.f32.mrb[0].mxu0
    %662 = vdwg.mxu0
    %v663 = vadd.f32 %v490, %v660
    %v664 = vadd.f32 %v663, %v442
    %v665 = vxor.u32 %v664, 2147483648
    %v666 = vmul.f32 %v665, 1.442695
    %v667 = vpow.pop %v666
    %v668 = vadd.f32 %v667, 1.0
    %v669 = vrcp.pop %v668
    %v670 = vmul.f32 1.0, %v669
    %v671 = vtanh.pop %v664
    %v672 = vmul.f32 %v670, %v462
    %674 = vrot.lane.b32.xlu0 %v671, 64
    %v675 = vpop.permute.xlu0 %674
    %v677 = vmul.f32 %v670, %v675
    %679 = vrot.lane.b32.xlu0 %v677, 32
    %v680 = vpop.permute.xlu0 %679
    %v682 = vadd.f32 %v672, %v680
    %v683 = vtanh.pop %v682
    %685 = vrot.lane.b32.xlu0 %v683, 64
    %v686 = vpop.permute.xlu0 %685
    %v688 = vmul.f32 %v670, %v686
    %690 = vrot.lane.b32.xlu0 %v588, 32
    %v691 = vpop.permute.xlu0 %690
    %694 = vrot.lane.b32.xlu0 %v688, 96
    %v695 = vpop.permute.xlu0 %694
    %698 = vrot.lane.b32.xlu0 %v682, 64
    %v699 = vpop.permute.xlu0 %698
    %v701 = vsel %vm95, %v691, %v582
    %v702 = vsel %vm482, %v701, %v695
    %v703 = vsel %vm484, %v702, %v699
    %s704 = scalar_lea.vmem [#allocation11], 8
    %705 = vst [vmem:[%s704] sm:$0xff] %v703
    %s706 = scalar_lea.vmem [#allocation2], 32
    %v707 = vld [vmem:[%s706] sm:$0xff]
    %s708 = scalar_lea.vmem [#allocation2], 80
    %v709 = vld [vmem:[%s708 + $0x8] sm:$0xff]
    %v710 = vsel %vm95, %v691, 0
    %712 = vmatprep.subr.mxu0 0.0
    %713 = vmatpush1.msra.mxu0 %v249
    %714 = vmatprep.subr.mxu0 0.0
    %715 = vmatpush1.msra.mxu0 %v250
    %716 = vmatprep.subr.mxu0 0.0
    %717 = vmatpush1.msra.mxu0 %v251
    %718 = vmatprep.subr.mxu0 0.0
    %719 = vmatpush1.msra.mxu0 %v252
    %720 = vmatprep.subr.mxu0 0.0
    %721 = vmatpush1.msra.mxu0 0.0
    %722 = vmatprep.subr.mxu0 0.0
    %723 = vmatpush1.msra.mxu0 0.0
    %724 = vmatprep.subr.mxu0 0.0
    %725 = vmatpush1.msra.mxu0 0.0
    %726 = vmatprep.subr.mxu0 0.0
    %727 = vmatpush1.msra.mxu0 0.0
    %728 = vmatprep.subr.mxu0 0.0
    %729 = vmatpush1.msra.mxu0 0.0
    %730 = vmatprep.subr.mxu0 0.0
    %731 = vmatpush1.msra.mxu0 0.0
    %732 = vmatprep.subr.mxu0 0.0
    %733 = vmatpush1.msra.mxu0 0.0
    %734 = vmatprep.subr.mxu0 0.0
    %735 = vmatpush1.msra.mxu0 0.0
    %736 = vmatprep.subr.mxu0 0.0
    %737 = vmatpush1.msra.mxu0 0.0
    %738 = vmatprep.subr.mxu0 0.0
    %739 = vmatpush1.msra.mxu0 0.0
    %740 = vmatprep.subr.mxu0 0.0
    %741 = vmatpush1.msra.mxu0 0.0
    %742 = vmatprep.subr.mxu0 0.0
    %743 = vmatpush1.msra.mxu0 0.0
    %744 = vmatprep.subr.mxu0 0.0
    %745 = vmatpush1.msra.mxu0 0.0
    %746 = vmatprep.subr.mxu0 0.0
    %747 = vmatpush1.msra.mxu0 0.0
    %748 = vmatprep.subr.mxu0 0.0
    %749 = vmatpush1.msra.mxu0 0.0
    %750 = vmatprep.subr.mxu0 0.0
    %751 = vmatpush1.msra.mxu0 0.0
    %752 = vmatprep.subr.mxu0 0.0
    %753 = vmatpush1.msra.mxu0 0.0
    %754 = vmatprep.subr.mxu0 0.0
    %755 = vmatpush1.msra.mxu0 0.0
    %756 = vmatprep.subr.mxu0 0.0
    %757 = vmatpush1.msra.mxu0 0.0
    %758 = vmatprep.subr.mxu0 0.0
    %759 = vmatpush1.msra.mxu0 0.0
    %760 = vmatprep.subr.mxu0 0.0
    %761 = vmatpush1.msra.mxu0 0.0
    %762 = vmatprep.subr.mxu0 0.0
    %763 = vmatpush1.msra.mxu0 0.0
    %764 = vmatprep.subr.mxu0 0.0
    %765 = vmatpush1.msra.mxu0 0.0
    %766 = vmatprep.subr.mxu0 0.0
    %767 = vmatpush1.msra.mxu0 0.0
    %768 = vmatprep.subr.mxu0 0.0
    %769 = vmatpush1.msra.mxu0 0.0
    %770 = vmatprep.subr.mxu0 0.0
    %771 = vmatpush1.msra.mxu0 0.0
    %772 = vmatprep.subr.mxu0 0.0
    %773 = vmatpush1.msra.mxu0 0.0
    %774 = vmatprep.subr.mxu0 0.0
    %775 = vmatpush1.msra.mxu0 0.0
    %776 = vmatprep.mubr.f32.mxu0 0.0
    %777 = vmatmul.mubr.f32.gmra.mrb[0].mxu0 %v710
    %v778 = vpop.f32.mrb[0].mxu0
    %v779 = vadd.f32 0.0, %v778
    %v780 = vpop.f32.mrb[0].mxu0
    %781 = vdwg.mxu0
    %v782 = vadd.f32 %v707, %v779
    %v783 = vadd.f32 %v782, %v340
    %v784 = vxor.u32 %v783, 2147483648
    %v785 = vmul.f32 %v784, 1.442695
    %v786 = vpow.pop %v785
    %v787 = vadd.f32 %v786, 1.0
    %v788 = vrcp.pop %v787
    %v789 = vmul.f32 1.0, %v788
    %v790 = vtanh.pop %v783
    %v791 = vmul.f32 %v789, %v582
    %793 = vrot.lane.b32.xlu0 %v790, 64
    %v794 = vpop.permute.xlu0 %793
    %v796 = vmul.f32 %v789, %v794
    %798 = vrot.lane.b32.xlu0 %v796, 32
    %v799 = vpop.permute.xlu0 %798
    %v801 = vadd.f32 %v791, %v799
    %v802 = vtanh.pop %v801
    %804 = vrot.lane.b32.xlu0 %v802, 64
    %v805 = vpop.permute.xlu0 %804
    %v807 = vmul.f32 %v789, %v805
    %808 = vrot.lane.b32.xlu0 %v688, 32
    %v809 = vpop.permute.xlu0 %808
    %v810 = vsel %vm95, %v809, 0
    %812 = vmatprep.subr.mxu0 0.0
    %813 = vmatpush1.msra.mxu0 %v253
    %814 = vmatprep.subr.mxu0 0.0
    %815 = vmatpush1.msra.mxu0 %v254
    %816 = vmatprep.subr.mxu0 0.0
    %817 = vmatpush1.msra.mxu0 %v255
    %818 = vmatprep.subr.mxu0 0.0
    %819 = vmatpush1.msra.mxu0 %v256
    %820 = vmatprep.subr.mxu0 0.0
    %821 = vmatpush1.msra.mxu0 0.0
    %822 = vmatprep.subr.mxu0 0.0
    %823 = vmatpush1.msra.mxu0 0.0
    %824 = vmatprep.subr.mxu0 0.0
    %825 = vmatpush1.msra.mxu0 0.0
    %826 = vmatprep.subr.mxu0 0.0
    %827 = vmatpush1.msra.mxu0 0.0
    %828 = vmatprep.subr.mxu0 0.0
    %829 = vmatpush1.msra.mxu0 0.0
    %830 = vmatprep.subr.mxu0 0.0
    %831 = vmatpush1.msra.mxu0 0.0
    %832 = vmatprep.subr.mxu0 0.0
    %833 = vmatpush1.msra.mxu0 0.0
    %834 = vmatprep.subr.mxu0 0.0
    %835 = vmatpush1.msra.mxu0 0.0
    %836 = vmatprep.subr.mxu0 0.0
    %837 = vmatpush1.msra.mxu0 0.0
    %838 = vmatprep.subr.mxu0 0.0
    %839 = vmatpush1.msra.mxu0 0.0
    %840 = vmatprep.subr.mxu0 0.0
    %841 = vmatpush1.msra.mxu0 0.0
    %842 = vmatprep.subr.mxu0 0.0
    %843 = vmatpush1.msra.mxu0 0.0
    %844 = vmatprep.subr.mxu0 0.0
    %845 = vmatpush1.msra.mxu0 0.0
    %846 = vmatprep.subr.mxu0 0.0
    %847 = vmatpush1.msra.mxu0 0.0
    %848 = vmatprep.subr.mxu0 0.0
    %849 = vmatpush1.msra.mxu0 0.0
    %850 = vmatprep.subr.mxu0 0.0
    %851 = vmatpush1.msra.mxu0 0.0
    %852 = vmatprep.subr.mxu0 0.0
    %853 = vmatpush1.msra.mxu0 0.0
    %854 = vmatprep.subr.mxu0 0.0
    %855 = vmatpush1.msra.mxu0 0.0
    %856 = vmatprep.subr.mxu0 0.0
    %857 = vmatpush1.msra.mxu0 0.0
    %858 = vmatprep.subr.mxu0 0.0
    %859 = vmatpush1.msra.mxu0 0.0
    %860 = vmatprep.subr.mxu0 0.0
    %861 = vmatpush1.msra.mxu0 0.0
    %862 = vmatprep.subr.mxu0 0.0
    %863 = vmatpush1.msra.mxu0 0.0
    %864 = vmatprep.subr.mxu0 0.0
    %865 = vmatpush1.msra.mxu0 0.0
    %866 = vmatprep.subr.mxu0 0.0
    %867 = vmatpush1.msra.mxu0 0.0
    %868 = vmatprep.subr.mxu0 0.0
    %869 = vmatpush1.msra.mxu0 0.0
    %870 = vmatprep.subr.mxu0 0.0
    %871 = vmatpush1.msra.mxu0 0.0
    %872 = vmatprep.subr.mxu0 0.0
    %873 = vmatpush1.msra.mxu0 0.0
    %874 = vmatprep.subr.mxu0 0.0
    %875 = vmatpush1.msra.mxu0 0.0
    %876 = vmatprep.mubr.f32.mxu0 0.0
    %877 = vmatmul.mubr.f32.gmra.mrb[0].mxu0 %v810
    %v878 = vpop.f32.mrb[0].mxu0
    %v879 = vadd.f32 0.0, %v878
    %v880 = vpop.f32.mrb[0].mxu0
    %881 = vdwg.mxu0
    %v882 = vadd.f32 %v709, %v879
    %v883 = vadd.f32 %v882, %v442
    %v884 = vxor.u32 %v883, 2147483648
    %v885 = vmul.f32 %v884, 1.442695
    %v886 = vpow.pop %v885
    %v887 = vadd.f32 %v886, 1.0
    %v888 = vrcp.pop %v887
    %v889 = vmul.f32 1.0, %v888
    %v890 = vtanh.pop %v883
    %v891 = vmul.f32 %v889, %v682
    %893 = vrot.lane.b32.xlu0 %v890, 64
    %v894 = vpop.permute.xlu0 %893
    %v896 = vmul.f32 %v889, %v894
    %898 = vrot.lane.b32.xlu0 %v896, 32
    %v899 = vpop.permute.xlu0 %898
    %v901 = vadd.f32 %v891, %v899
    %v902 = vtanh.pop %v901
    %904 = vrot.lane.b32.xlu0 %v902, 64
    %v905 = vpop.permute.xlu0 %904
    %v907 = vmul.f32 %v889, %v905
    %909 = vrot.lane.b32.xlu0 %v807, 32
    %v910 = vpop.permute.xlu0 %909
    %913 = vrot.lane.b32.xlu0 %v907, 96
    %v914 = vpop.permute.xlu0 %913
    %917 = vrot.lane.b32.xlu0 %v901, 64
    %v918 = vpop.permute.xlu0 %917
    %v920 = vsel %vm95, %v910, %v801
    %v921 = vsel %vm482, %v920, %v914
    %v922 = vsel %vm484, %v921, %v918
    %s923 = scalar_lea.vmem [#allocation11], 16
    %924 = vst [vmem:[%s923] sm:$0xff] %v922
    %s925 = scalar_lea.vmem [#allocation2], 48
    %v926 = vld [vmem:[%s925] sm:$0xff]
    %s927 = scalar_lea.vmem [#allocation2], 64
    %v928 = vld [vmem:[%s927 + $0x8] sm:$0xff]
    %v929 = vsel %vm95, %v910, 0
    %931 = vmatprep.subr.mxu0 0.0
    %932 = vmatpush1.msra.mxu0 %v249
    %933 = vmatprep.subr.mxu0 0.0
    %934 = vmatpush1.msra.mxu0 %v250
    %935 = vmatprep.subr.mxu0 0.0
    %936 = vmatpush1.msra.mxu0 %v251
    %937 = vmatprep.subr.mxu0 0.0
    %938 = vmatpush1.msra.mxu0 %v252
    %939 = vmatprep.subr.mxu0 0.0
    %940 = vmatpush1.msra.mxu0 0.0
    %941 = vmatprep.subr.mxu0 0.0
    %942 = vmatpush1.msra.mxu0 0.0
    %943 = vmatprep.subr.mxu0 0.0
    %944 = vmatpush1.msra.mxu0 0.0
    %945 = vmatprep.subr.mxu0 0.0
    %946 = vmatpush1.msra.mxu0 0.0
    %947 = vmatprep.subr.mxu0 0.0
    %948 = vmatpush1.msra.mxu0 0.0
    %949 = vmatprep.subr.mxu0 0.0
    %950 = vmatpush1.msra.mxu0 0.0
    %951 = vmatprep.subr.mxu0 0.0
    %952 = vmatpush1.msra.mxu0 0.0
    %953 = vmatprep.subr.mxu0 0.0
    %954 = vmatpush1.msra.mxu0 0.0
    %955 = vmatprep.subr.mxu0 0.0
    %956 = vmatpush1.msra.mxu0 0.0
    %957 = vmatprep.subr.mxu0 0.0
    %958 = vmatpush1.msra.mxu0 0.0
    %959 = vmatprep.subr.mxu0 0.0
    %960 = vmatpush1.msra.mxu0 0.0
    %961 = vmatprep.subr.mxu0 0.0
    %962 = vmatpush1.msra.mxu0 0.0
    %963 = vmatprep.subr.mxu0 0.0
    %964 = vmatpush1.msra.mxu0 0.0
    %965 = vmatprep.subr.mxu0 0.0
    %966 = vmatpush1.msra.mxu0 0.0
    %967 = vmatprep.subr.mxu0 0.0
    %968 = vmatpush1.msra.mxu0 0.0
    %969 = vmatprep.subr.mxu0 0.0
    %970 = vmatpush1.msra.mxu0 0.0
    %971 = vmatprep.subr.mxu0 0.0
    %972 = vmatpush1.msra.mxu0 0.0
    %973 = vmatprep.subr.mxu0 0.0
    %974 = vmatpush1.msra.mxu0 0.0
    %975 = vmatprep.subr.mxu0 0.0
    %976 = vmatpush1.msra.mxu0 0.0
    %977 = vmatprep.subr.mxu0 0.0
    %978 = vmatpush1.msra.mxu0 0.0
    %979 = vmatprep.subr.mxu0 0.0
    %980 = vmatpush1.msra.mxu0 0.0
    %981 = vmatprep.subr.mxu0 0.0
    %982 = vmatpush1.msra.mxu0 0.0
    %983 = vmatprep.subr.mxu0 0.0
    %984 = vmatpush1.msra.mxu0 0.0
    %985 = vmatprep.subr.mxu0 0.0
    %986 = vmatpush1.msra.mxu0 0.0
    %987 = vmatprep.subr.mxu0 0.0
    %988 = vmatpush1.msra.mxu0 0.0
    %989 = vmatprep.subr.mxu0 0.0
    %990 = vmatpush1.msra.mxu0 0.0
    %991 = vmatprep.subr.mxu0 0.0
    %992 = vmatpush1.msra.mxu0 0.0
    %993 = vmatprep.subr.mxu0 0.0
    %994 = vmatpush1.msra.mxu0 0.0
    %995 = vmatprep.mubr.f32.mxu0 0.0
    %996 = vmatmul.mubr.f32.gmra.mrb[0].mxu0 %v929
    %v997 = vpop.f32.mrb[0].mxu0
    %v998 = vadd.f32 0.0, %v997
    %v999 = vpop.f32.mrb[0].mxu0
    %1000 = vdwg.mxu0
    %v1001 = vadd.f32 %v926, %v998
    %v1002 = vadd.f32 %v1001, %v340
    %v1003 = vxor.u32 %v1002, 2147483648
    %v1004 = vmul.f32 %v1003, 1.442695
    %v1005 = vpow.pop %v1004
    %v1006 = vadd.f32 %v1005, 1.0
    %v1007 = vrcp.pop %v1006
    %v1008 = vmul.f32 1.0, %v1007
    %v1009 = vtanh.pop %v1002
    %v1010 = vmul.f32 %v1008, %v801
    %1012 = vrot.lane.b32.xlu0 %v1009, 64
    %v1013 = vpop.permute.xlu0 %1012
    %v1015 = vmul.f32 %v1008, %v1013
    %1017 = vrot.lane.b32.xlu0 %v1015, 32
    %v1018 = vpop.permute.xlu0 %1017
    %v1020 = vadd.f32 %v1010, %v1018
    %v1021 = vtanh.pop %v1020
    %1023 = vrot.lane.b32.xlu0 %v1021, 64
    %v1024 = vpop.permute.xlu0 %1023
    %v1026 = vmul.f32 %v1008, %v1024
    %1027 = vrot.lane.b32.xlu0 %v907, 32
    %v1028 = vpop.permute.xlu0 %1027
    %v1029 = vsel %vm95, %v1028, 0
    %1031 = vmatprep.subr.mxu0 0.0
    %1032 = vmatpush1.msra.mxu0 %v253
    %1033 = vmatprep.subr.mxu0 0.0
    %1034 = vmatpush1.msra.mxu0 %v254
    %1035 = vmatprep.subr.mxu0 0.0
    %1036 = vmatpush1.msra.mxu0 %v255
    %1037 = vmatprep.subr.mxu0 0.0
    %1038 = vmatpush1.msra.mxu0 %v256
    %1039 = vmatprep.subr.mxu0 0.0
    %1040 = vmatpush1.msra.mxu0 0.0
    %1041 = vmatprep.subr.mxu0 0.0
    %1042 = vmatpush1.msra.mxu0 0.0
    %1043 = vmatprep.subr.mxu0 0.0
    %1044 = vmatpush1.msra.mxu0 0.0
    %1045 = vmatprep.subr.mxu0 0.0
    %1046 = vmatpush1.msra.mxu0 0.0
    %1047 = vmatprep.subr.mxu0 0.0
    %1048 = vmatpush1.msra.mxu0 0.0
    %1049 = vmatprep.subr.mxu0 0.0
    %1050 = vmatpush1.msra.mxu0 0.0
    %1051 = vmatprep.subr.mxu0 0.0
    %1052 = vmatpush1.msra.mxu0 0.0
    %1053 = vmatprep.subr.mxu0 0.0
    %1054 = vmatpush1.msra.mxu0 0.0
    %1055 = vmatprep.subr.mxu0 0.0
    %1056 = vmatpush1.msra.mxu0 0.0
    %1057 = vmatprep.subr.mxu0 0.0
    %1058 = vmatpush1.msra.mxu0 0.0
    %1059 = vmatprep.subr.mxu0 0.0
    %1060 = vmatpush1.msra.mxu0 0.0
    %1061 = vmatprep.subr.mxu0 0.0
    %1062 = vmatpush1.msra.mxu0 0.0
    %1063 = vmatprep.subr.mxu0 0.0
    %1064 = vmatpush1.msra.mxu0 0.0
    %1065 = vmatprep.subr.mxu0 0.0
    %1066 = vmatpush1.msra.mxu0 0.0
    %1067 = vmatprep.subr.mxu0 0.0
    %1068 = vmatpush1.msra.mxu0 0.0
    %1069 = vmatprep.subr.mxu0 0.0
    %1070 = vmatpush1.msra.mxu0 0.0
    %1071 = vmatprep.subr.mxu0 0.0
    %1072 = vmatpush1.msra.mxu0 0.0
    %1073 = vmatprep.subr.mxu0 0.0
    %1074 = vmatpush1.msra.mxu0 0.0
    %1075 = vmatprep.subr.mxu0 0.0
    %1076 = vmatpush1.msra.mxu0 0.0
    %1077 = vmatprep.subr.mxu0 0.0
    %1078 = vmatpush1.msra.mxu0 0.0
    %1079 = vmatprep.subr.mxu0 0.0
    %1080 = vmatpush1.msra.mxu0 0.0
    %1081 = vmatprep.subr.mxu0 0.0
    %1082 = vmatpush1.msra.mxu0 0.0
    %1083 = vmatprep.subr.mxu0 0.0
    %1084 = vmatpush1.msra.mxu0 0.0
    %1085 = vmatprep.subr.mxu0 0.0
    %1086 = vmatpush1.msra.mxu0 0.0
    %1087 = vmatprep.subr.mxu0 0.0
    %1088 = vmatpush1.msra.mxu0 0.0
    %1089 = vmatprep.subr.mxu0 0.0
    %1090 = vmatpush1.msra.mxu0 0.0
    %1091 = vmatprep.subr.mxu0 0.0
    %1092 = vmatpush1.msra.mxu0 0.0
    %1093 = vmatprep.subr.mxu0 0.0
    %1094 = vmatpush1.msra.mxu0 0.0
    %1095 = vmatprep.mubr.f32.mxu0 0.0
    %1096 = vmatmul.mubr.f32.gmra.mrb[0].mxu0 %v1029
    %v1097 = vpop.f32.mrb[0].mxu0
    %v1098 = vadd.f32 0.0, %v1097
    %v1099 = vpop.f32.mrb[0].mxu0
    %1100 = vdwg.mxu0
    %v1101 = vadd.f32 %v928, %v1098
    %v1102 = vadd.f32 %v1101, %v442
    %v1103 = vxor.u32 %v1102, 2147483648
    %v1104 = vmul.f32 %v1103, 1.442695
    %v1105 = vpow.pop %v1104
    %v1106 = vadd.f32 %v1105, 1.0
    %v1107 = vrcp.pop %v1106
    %v1108 = vmul.f32 1.0, %v1107
    %v1109 = vtanh.pop %v1102
    %v1110 = vmul.f32 %v1108, %v901
    %1112 = vrot.lane.b32.xlu0 %v1109, 64
    %v1113 = vpop.permute.xlu0 %1112
    %v1115 = vmul.f32 %v1108, %v1113
    %1117 = vrot.lane.b32.xlu0 %v1115, 32
    %v1118 = vpop.permute.xlu0 %1117
    %v1120 = vadd.f32 %v1110, %v1118
    %v1121 = vtanh.pop %v1120
    %1123 = vrot.lane.b32.xlu0 %v1121, 64
    %v1124 = vpop.permute.xlu0 %1123
    %v1126 = vmul.f32 %v1108, %v1124
    %1128 = vrot.lane.b32.xlu0 %v1026, 32
    %v1129 = vpop.permute.xlu0 %1128
    %1132 = vrot.lane.b32.xlu0 %v1126, 96
    %v1133 = vpop.permute.xlu0 %1132
    %1136 = vrot.lane.b32.xlu0 %v1120, 64
    %v1137 = vpop.permute.xlu0 %1136
    %v1139 = vsel %vm95, %v1129, %v1020
    %v1140 = vsel %vm482, %v1139, %v1133
    %v1141 = vsel %vm484, %v1140, %v1137
    %s1142 = scalar_lea.vmem [#allocation11], 24
    %1143 = vst [vmem:[%s1142] sm:$0xff] %v1141
    %v1144 = vld [vmem:[%s927] sm:$0xff]
    %v1145 = vld [vmem:[%s925 + $0x8] sm:$0xff]
    %v1146 = vsel %vm95, %v1129, 0
    %1148 = vmatprep.subr.mxu0 0.0
    %1149 = vmatpush1.msra.mxu0 %v249
    %1150 = vmatprep.subr.mxu0 0.0
    %1151 = vmatpush1.msra.mxu0 %v250
    %1152 = vmatprep.subr.mxu0 0.0
    %1153 = vmatpush1.msra.mxu0 %v251
    %1154 = vmatprep.subr.mxu0 0.0
    %1155 = vmatpush1.msra.mxu0 %v252
    %1156 = vmatprep.subr.mxu0 0.0
    %1157 = vmatpush1.msra.mxu0 0.0
    %1158 = vmatprep.subr.mxu0 0.0
    %1159 = vmatpush1.msra.mxu0 0.0
    %1160 = vmatprep.subr.mxu0 0.0
    %1161 = vmatpush1.msra.mxu0 0.0
    %1162 = vmatprep.subr.mxu0 0.0
    %1163 = vmatpush1.msra.mxu0 0.0
    %1164 = vmatprep.subr.mxu0 0.0
    %1165 = vmatpush1.msra.mxu0 0.0
    %1166 = vmatprep.subr.mxu0 0.0
    %1167 = vmatpush1.msra.mxu0 0.0
    %1168 = vmatprep.subr.mxu0 0.0
    %1169 = vmatpush1.msra.mxu0 0.0
    %1170 = vmatprep.subr.mxu0 0.0
    %1171 = vmatpush1.msra.mxu0 0.0
    %1172 = vmatprep.subr.mxu0 0.0
    %1173 = vmatpush1.msra.mxu0 0.0
    %1174 = vmatprep.subr.mxu0 0.0
    %1175 = vmatpush1.msra.mxu0 0.0
    %1176 = vmatprep.subr.mxu0 0.0
    %1177 = vmatpush1.msra.mxu0 0.0
    %1178 = vmatprep.subr.mxu0 0.0
    %1179 = vmatpush1.msra.mxu0 0.0
    %1180 = vmatprep.subr.mxu0 0.0
    %1181 = vmatpush1.msra.mxu0 0.0
    %1182 = vmatprep.subr.mxu0 0.0
    %1183 = vmatpush1.msra.mxu0 0.0
    %1184 = vmatprep.subr.mxu0 0.0
    %1185 = vmatpush1.msra.mxu0 0.0
    %1186 = vmatprep.subr.mxu0 0.0
    %1187 = vmatpush1.msra.mxu0 0.0
    %1188 = vmatprep.subr.mxu0 0.0
    %1189 = vmatpush1.msra.mxu0 0.0
    %1190 = vmatprep.subr.mxu0 0.0
    %1191 = vmatpush1.msra.mxu0 0.0
    %1192 = vmatprep.subr.mxu0 0.0
    %1193 = vmatpush1.msra.mxu0 0.0
    %1194 = vmatprep.subr.mxu0 0.0
    %1195 = vmatpush1.msra.mxu0 0.0
    %1196 = vmatprep.subr.mxu0 0.0
    %1197 = vmatpush1.msra.mxu0 0.0
    %1198 = vmatprep.subr.mxu0 0.0
    %1199 = vmatpush1.msra.mxu0 0.0
    %1200 = vmatprep.subr.mxu0 0.0
    %1201 = vmatpush1.msra.mxu0 0.0
    %1202 = vmatprep.subr.mxu0 0.0
    %1203 = vmatpush1.msra.mxu0 0.0
    %1204 = vmatprep.subr.mxu0 0.0
    %1205 = vmatpush1.msra.mxu0 0.0
    %1206 = vmatprep.subr.mxu0 0.0
    %1207 = vmatpush1.msra.mxu0 0.0
    %1208 = vmatprep.subr.mxu0 0.0
    %1209 = vmatpush1.msra.mxu0 0.0
    %1210 = vmatprep.subr.mxu0 0.0
    %1211 = vmatpush1.msra.mxu0 0.0
    %1212 = vmatprep.mubr.f32.mxu0 0.0
    %1213 = vmatmul.mubr.f32.gmra.mrb[0].mxu0 %v1146
    %v1214 = vpop.f32.mrb[0].mxu0
    %v1215 = vadd.f32 0.0, %v1214
    %v1216 = vpop.f32.mrb[0].mxu0
    %1217 = vdwg.mxu0
    %v1218 = vadd.f32 %v1144, %v1215
    %v1219 = vadd.f32 %v1218, %v340
    %v1220 = vxor.u32 %v1219, 2147483648
    %v1221 = vmul.f32 %v1220, 1.442695
    %v1222 = vpow.pop %v1221
    %v1223 = vadd.f32 %v1222, 1.0
    %v1224 = vrcp.pop %v1223
    %v1225 = vmul.f32 1.0, %v1224
    %v1226 = vtanh.pop %v1219
    %v1227 = vmul.f32 %v1225, %v1020
    %1229 = vrot.lane.b32.xlu0 %v1226, 64
    %v1230 = vpop.permute.xlu0 %1229
    %v1232 = vmul.f32 %v1225, %v1230
    %1234 = vrot.lane.b32.xlu0 %v1232, 32
    %v1235 = vpop.permute.xlu0 %1234
    %v1237 = vadd.f32 %v1227, %v1235
    %v1238 = vtanh.pop %v1237
    %1240 = vrot.lane.b32.xlu0 %v1238, 64
    %v1241 = vpop.permute.xlu0 %1240
    %v1243 = vmul.f32 %v1225, %v1241
    %1244 = vrot.lane.b32.xlu0 %v1126, 32
    %v1245 = vpop.permute.xlu0 %1244
    %v1246 = vsel %vm95, %v1245, 0
    %1248 = vmatprep.subr.mxu0 0.0
    %1249 = vmatpush1.msra.mxu0 %v253
    %1250 = vmatprep.subr.mxu0 0.0
    %1251 = vmatpush1.msra.mxu0 %v254
    %1252 = vmatprep.subr.mxu0 0.0
    %1253 = vmatpush1.msra.mxu0 %v255
    %1254 = vmatprep.subr.mxu0 0.0
    %1255 = vmatpush1.msra.mxu0 %v256
    %1256 = vmatprep.subr.mxu0 0.0
    %1257 = vmatpush1.msra.mxu0 0.0
    %1258 = vmatprep.subr.mxu0 0.0
    %1259 = vmatpush1.msra.mxu0 0.0
    %1260 = vmatprep.subr.mxu0 0.0
    %1261 = vmatpush1.msra.mxu0 0.0
    %1262 = vmatprep.subr.mxu0 0.0
    %1263 = vmatpush1.msra.mxu0 0.0
    %1264 = vmatprep.subr.mxu0 0.0
    %1265 = vmatpush1.msra.mxu0 0.0
    %1266 = vmatprep.subr.mxu0 0.0
    %1267 = vmatpush1.msra.mxu0 0.0
    %1268 = vmatprep.subr.mxu0 0.0
    %1269 = vmatpush1.msra.mxu0 0.0
    %1270 = vmatprep.subr.mxu0 0.0
    %1271 = vmatpush1.msra.mxu0 0.0
    %1272 = vmatprep.subr.mxu0 0.0
    %1273 = vmatpush1.msra.mxu0 0.0
    %1274 = vmatprep.subr.mxu0 0.0
    %1275 = vmatpush1.msra.mxu0 0.0
    %1276 = vmatprep.subr.mxu0 0.0
    %1277 = vmatpush1.msra.mxu0 0.0
    %1278 = vmatprep.subr.mxu0 0.0
    %1279 = vmatpush1.msra.mxu0 0.0
    %1280 = vmatprep.subr.mxu0 0.0
    %1281 = vmatpush1.msra.mxu0 0.0
    %1282 = vmatprep.subr.mxu0 0.0
    %1283 = vmatpush1.msra.mxu0 0.0
    %1284 = vmatprep.subr.mxu0 0.0
    %1285 = vmatpush1.msra.mxu0 0.0
    %1286 = vmatprep.subr.mxu0 0.0
    %1287 = vmatpush1.msra.mxu0 0.0
    %1288 = vmatprep.subr.mxu0 0.0
    %1289 = vmatpush1.msra.mxu0 0.0
    %1290 = vmatprep.subr.mxu0 0.0
    %1291 = vmatpush1.msra.mxu0 0.0
    %1292 = vmatprep.subr.mxu0 0.0
    %1293 = vmatpush1.msra.mxu0 0.0
    %1294 = vmatprep.subr.mxu0 0.0
    %1295 = vmatpush1.msra.mxu0 0.0
    %1296 = vmatprep.subr.mxu0 0.0
    %1297 = vmatpush1.msra.mxu0 0.0
    %1298 = vmatprep.subr.mxu0 0.0
    %1299 = vmatpush1.msra.mxu0 0.0
    %1300 = vmatprep.subr.mxu0 0.0
    %1301 = vmatpush1.msra.mxu0 0.0
    %1302 = vmatprep.subr.mxu0 0.0
    %1303 = vmatpush1.msra.mxu0 0.0
    %1304 = vmatprep.subr.mxu0 0.0
    %1305 = vmatpush1.msra.mxu0 0.0
    %1306 = vmatprep.subr.mxu0 0.0
    %1307 = vmatpush1.msra.mxu0 0.0
    %1308 = vmatprep.subr.mxu0 0.0
    %1309 = vmatpush1.msra.mxu0 0.0
    %1310 = vmatprep.subr.mxu0 0.0
    %1311 = vmatpush1.msra.mxu0 0.0
    %1312 = vmatprep.mubr.f32.mxu0 0.0
    %1313 = vmatmul.mubr.f32.gmra.mrb[0].mxu0 %v1246
    %v1314 = vpop.f32.mrb[0].mxu0
    %v1315 = vadd.f32 0.0, %v1314
    %v1316 = vpop.f32.mrb[0].mxu0
    %1317 = vdwg.mxu0
    %v1318 = vadd.f32 %v1145, %v1315
    %v1319 = vadd.f32 %v1318, %v442
    %v1320 = vxor.u32 %v1319, 2147483648
    %v1321 = vmul.f32 %v1320, 1.442695
    %v1322 = vpow.pop %v1321
    %v1323 = vadd.f32 %v1322, 1.0
    %v1324 = vrcp.pop %v1323
    %v1325 = vmul.f32 1.0, %v1324
    %v1326 = vtanh.pop %v1319
    %v1327 = vmul.f32 %v1325, %v1120
    %1329 = vrot.lane.b32.xlu0 %v1326, 64
    %v1330 = vpop.permute.xlu0 %1329
    %v1332 = vmul.f32 %v1325, %v1330
    %1334 = vrot.lane.b32.xlu0 %v1332, 32
    %v1335 = vpop.permute.xlu0 %1334
    %v1337 = vadd.f32 %v1327, %v1335
    %v1338 = vtanh.pop %v1337
    %1340 = vrot.lane.b32.xlu0 %v1338, 64
    %v1341 = vpop.permute.xlu0 %1340
    %v1343 = vmul.f32 %v1325, %v1341
    %1345 = vrot.lane.b32.xlu0 %v1243, 32
    %v1346 = vpop.permute.xlu0 %1345
    %1349 = vrot.lane.b32.xlu0 %v1343, 96
    %v1350 = vpop.permute.xlu0 %1349
    %1353 = vrot.lane.b32.xlu0 %v1337, 64
    %v1354 = vpop.permute.xlu0 %1353
    %v1356 = vsel %vm95, %v1346, %v1237
    %v1357 = vsel %vm482, %v1356, %v1350
    %v1358 = vsel %vm484, %v1357, %v1354
    %s1359 = scalar_lea.vmem [#allocation11], 32
    %1360 = vst [vmem:[%s1359] sm:$0xff] %v1358
    %v1361 = vld [vmem:[%s708] sm:$0xff]
    %v1362 = vld [vmem:[%s706 + $0x8] sm:$0xff]
    %v1363 = vsel %vm95, %v1346, 0
    %1365 = vmatprep.subr.mxu0 0.0
    %1366 = vmatpush1.msra.mxu0 %v249
    %1367 = vmatprep.subr.mxu0 0.0
    %1368 = vmatpush1.msra.mxu0 %v250
    %1369 = vmatprep.subr.mxu0 0.0
    %1370 = vmatpush1.msra.mxu0 %v251
    %1371 = vmatprep.subr.mxu0 0.0
    %1372 = vmatpush1.msra.mxu0 %v252
    %1373 = vmatprep.subr.mxu0 0.0
    %1374 = vmatpush1.msra.mxu0 0.0
    %1375 = vmatprep.subr.mxu0 0.0
    %1376 = vmatpush1.msra.mxu0 0.0
    %1377 = vmatprep.subr.mxu0 0.0
    %1378 = vmatpush1.msra.mxu0 0.0
    %1379 = vmatprep.subr.mxu0 0.0
    %1380 = vmatpush1.msra.mxu0 0.0
    %1381 = vmatprep.subr.mxu0 0.0
    %1382 = vmatpush1.msra.mxu0 0.0
    %1383 = vmatprep.subr.mxu0 0.0
    %1384 = vmatpush1.msra.mxu0 0.0
    %1385 = vmatprep.subr.mxu0 0.0
    %1386 = vmatpush1.msra.mxu0 0.0
    %1387 = vmatprep.subr.mxu0 0.0
    %1388 = vmatpush1.msra.mxu0 0.0
    %1389 = vmatprep.subr.mxu0 0.0
    %1390 = vmatpush1.msra.mxu0 0.0
    %1391 = vmatprep.subr.mxu0 0.0
    %1392 = vmatpush1.msra.mxu0 0.0
    %1393 = vmatprep.subr.mxu0 0.0
    %1394 = vmatpush1.msra.mxu0 0.0
    %1395 = vmatprep.subr.mxu0 0.0
    %1396 = vmatpush1.msra.mxu0 0.0
    %1397 = vmatprep.subr.mxu0 0.0
    %1398 = vmatpush1.msra.mxu0 0.0
    %1399 = vmatprep.subr.mxu0 0.0
    %1400 = vmatpush1.msra.mxu0 0.0
    %1401 = vmatprep.subr.mxu0 0.0
    %1402 = vmatpush1.msra.mxu0 0.0
    %1403 = vmatprep.subr.mxu0 0.0
    %1404 = vmatpush1.msra.mxu0 0.0
    %1405 = vmatprep.subr.mxu0 0.0
    %1406 = vmatpush1.msra.mxu0 0.0
    %1407 = vmatprep.subr.mxu0 0.0
    %1408 = vmatpush1.msra.mxu0 0.0
    %1409 = vmatprep.subr.mxu0 0.0
    %1410 = vmatpush1.msra.mxu0 0.0
    %1411 = vmatprep.subr.mxu0 0.0
    %1412 = vmatpush1.msra.mxu0 0.0
    %1413 = vmatprep.subr.mxu0 0.0
    %1414 = vmatpush1.msra.mxu0 0.0
    %1415 = vmatprep.subr.mxu0 0.0
    %1416 = vmatpush1.msra.mxu0 0.0
    %1417 = vmatprep.subr.mxu0 0.0
    %1418 = vmatpush1.msra.mxu0 0.0
    %1419 = vmatprep.subr.mxu0 0.0
    %1420 = vmatpush1.msra.mxu0 0.0
    %1421 = vmatprep.subr.mxu0 0.0
    %1422 = vmatpush1.msra.mxu0 0.0
    %1423 = vmatprep.subr.mxu0 0.0
    %1424 = vmatpush1.msra.mxu0 0.0
    %1425 = vmatprep.subr.mxu0 0.0
    %1426 = vmatpush1.msra.mxu0 0.0
    %1427 = vmatprep.subr.mxu0 0.0
    %1428 = vmatpush1.msra.mxu0 0.0
    %1429 = vmatprep.mubr.f32.mxu0 0.0
    %1430 = vmatmul.mubr.f32.gmra.mrb[0].mxu0 %v1363
    %v1431 = vpop.f32.mrb[0].mxu0
    %v1432 = vadd.f32 0.0, %v1431
    %v1433 = vpop.f32.mrb[0].mxu0
    %1434 = vdwg.mxu0
    %v1435 = vadd.f32 %v1361, %v1432
    %v1436 = vadd.f32 %v1435, %v340
    %v1437 = vxor.u32 %v1436, 2147483648
    %v1438 = vmul.f32 %v1437, 1.442695
    %v1439 = vpow.pop %v1438
    %v1440 = vadd.f32 %v1439, 1.0
    %v1441 = vrcp.pop %v1440
    %v1442 = vmul.f32 1.0, %v1441
    %v1443 = vtanh.pop %v1436
    %v1444 = vmul.f32 %v1442, %v1237
    %1446 = vrot.lane.b32.xlu0 %v1443, 64
    %v1447 = vpop.permute.xlu0 %1446
    %v1449 = vmul.f32 %v1442, %v1447
    %1451 = vrot.lane.b32.xlu0 %v1449, 32
    %v1452 = vpop.permute.xlu0 %1451
    %v1454 = vadd.f32 %v1444, %v1452
    %v1455 = vtanh.pop %v1454
    %1457 = vrot.lane.b32.xlu0 %v1455, 64
    %v1458 = vpop.permute.xlu0 %1457
    %v1460 = vmul.f32 %v1442, %v1458
    %1461 = vrot.lane.b32.xlu0 %v1343, 32
    %v1462 = vpop.permute.xlu0 %1461
    %v1463 = vsel %vm95, %v1462, 0
    %1465 = vmatprep.subr.mxu0 0.0
    %1466 = vmatpush1.msra.mxu0 %v253
    %1467 = vmatprep.subr.mxu0 0.0
    %1468 = vmatpush1.msra.mxu0 %v254
    %1469 = vmatprep.subr.mxu0 0.0
    %1470 = vmatpush1.msra.mxu0 %v255
    %1471 = vmatprep.subr.mxu0 0.0
    %1472 = vmatpush1.msra.mxu0 %v256
    %1473 = vmatprep.subr.mxu0 0.0
    %1474 = vmatpush1.msra.mxu0 0.0
    %1475 = vmatprep.subr.mxu0 0.0
    %1476 = vmatpush1.msra.mxu0 0.0
    %1477 = vmatprep.subr.mxu0 0.0
    %1478 = vmatpush1.msra.mxu0 0.0
    %1479 = vmatprep.subr.mxu0 0.0
    %1480 = vmatpush1.msra.mxu0 0.0
    %1481 = vmatprep.subr.mxu0 0.0
    %1482 = vmatpush1.msra.mxu0 0.0
    %1483 = vmatprep.subr.mxu0 0.0
    %1484 = vmatpush1.msra.mxu0 0.0
    %1485 = vmatprep.subr.mxu0 0.0
    %1486 = vmatpush1.msra.mxu0 0.0
    %1487 = vmatprep.subr.mxu0 0.0
    %1488 = vmatpush1.msra.mxu0 0.0
    %1489 = vmatprep.subr.mxu0 0.0
    %1490 = vmatpush1.msra.mxu0 0.0
    %1491 = vmatprep.subr.mxu0 0.0
    %1492 = vmatpush1.msra.mxu0 0.0
    %1493 = vmatprep.subr.mxu0 0.0
    %1494 = vmatpush1.msra.mxu0 0.0
    %1495 = vmatprep.subr.mxu0 0.0
    %1496 = vmatpush1.msra.mxu0 0.0
    %1497 = vmatprep.subr.mxu0 0.0
    %1498 = vmatpush1.msra.mxu0 0.0
    %1499 = vmatprep.subr.mxu0 0.0
    %1500 = vmatpush1.msra.mxu0 0.0
    %1501 = vmatprep.subr.mxu0 0.0
    %1502 = vmatpush1.msra.mxu0 0.0
    %1503 = vmatprep.subr.mxu0 0.0
    %1504 = vmatpush1.msra.mxu0 0.0
    %1505 = vmatprep.subr.mxu0 0.0
    %1506 = vmatpush1.msra.mxu0 0.0
    %1507 = vmatprep.subr.mxu0 0.0
    %1508 = vmatpush1.msra.mxu0 0.0
    %1509 = vmatprep.subr.mxu0 0.0
    %1510 = vmatpush1.msra.mxu0 0.0
    %1511 = vmatprep.subr.mxu0 0.0
    %1512 = vmatpush1.msra.mxu0 0.0
    %1513 = vmatprep.subr.mxu0 0.0
    %1514 = vmatpush1.msra.mxu0 0.0
    %1515 = vmatprep.subr.mxu0 0.0
    %1516 = vmatpush1.msra.mxu0 0.0
    %1517 = vmatprep.subr.mxu0 0.0
    %1518 = vmatpush1.msra.mxu0 0.0
    %1519 = vmatprep.subr.mxu0 0.0
    %1520 = vmatpush1.msra.mxu0 0.0
    %1521 = vmatprep.subr.mxu0 0.0
    %1522 = vmatpush1.msra.mxu0 0.0
    %1523 = vmatprep.subr.mxu0 0.0
    %1524 = vmatpush1.msra.mxu0 0.0
    %1525 = vmatprep.subr.mxu0 0.0
    %1526 = vmatpush1.msra.mxu0 0.0
    %1527 = vmatprep.subr.mxu0 0.0
    %1528 = vmatpush1.msra.mxu0 0.0
    %1529 = vmatprep.mubr.f32.mxu0 0.0
    %1530 = vmatmul.mubr.f32.gmra.mrb[0].mxu0 %v1463
    %v1531 = vpop.f32.mrb[0].mxu0
    %v1532 = vadd.f32 0.0, %v1531
    %v1533 = vpop.f32.mrb[0].mxu0
    %1534 = vdwg.mxu0
    %v1535 = vadd.f32 %v1362, %v1532
    %v1536 = vadd.f32 %v1535, %v442
    %v1537 = vxor.u32 %v1536, 2147483648
    %v1538 = vmul.f32 %v1537, 1.442695
    %v1539 = vpow.pop %v1538
    %v1540 = vadd.f32 %v1539, 1.0
    %v1541 = vrcp.pop %v1540
    %v1542 = vmul.f32 1.0, %v1541
    %v1543 = vtanh.pop %v1536
    %v1544 = vmul.f32 %v1542, %v1337
    %1546 = vrot.lane.b32.xlu0 %v1543, 64
    %v1547 = vpop.permute.xlu0 %1546
    %v1549 = vmul.f32 %v1542, %v1547
    %1551 = vrot.lane.b32.xlu0 %v1549, 32
    %v1552 = vpop.permute.xlu0 %1551
    %v1554 = vadd.f32 %v1544, %v1552
    %v1555 = vtanh.pop %v1554
    %1557 = vrot.lane.b32.xlu0 %v1555, 64
    %v1558 = vpop.permute.xlu0 %1557
    %v1560 = vmul.f32 %v1542, %v1558
    %1562 = vrot.lane.b32.xlu0 %v1460, 32
    %v1563 = vpop.permute.xlu0 %1562
    %1566 = vrot.lane.b32.xlu0 %v1560, 96
    %v1567 = vpop.permute.xlu0 %1566
    %1570 = vrot.lane.b32.xlu0 %v1554, 64
    %v1571 = vpop.permute.xlu0 %1570
    %v1573 = vsel %vm95, %v1563, %v1454
    %v1574 = vsel %vm482, %v1573, %v1567
    %v1575 = vsel %vm484, %v1574, %v1571
    %s1576 = scalar_lea.vmem [#allocation11], 40
    %1577 = vst [vmem:[%s1576] sm:$0xff] %v1575
    %v1578 = vld [vmem:[%s489] sm:$0xff]
    %v1579 = vld [vmem:[%s487 + $0x8] sm:$0xff]
    %v1580 = vsel %vm95, %v1563, 0
    %1582 = vmatprep.subr.mxu0 0.0
    %1583 = vmatpush1.msra.mxu0 %v249
    %1584 = vmatprep.subr.mxu0 0.0
    %1585 = vmatpush1.msra.mxu0 %v250
    %1586 = vmatprep.subr.mxu0 0.0
    %1587 = vmatpush1.msra.mxu0 %v251
    %1588 = vmatprep.subr.mxu0 0.0
    %1589 = vmatpush1.msra.mxu0 %v252
    %1590 = vmatprep.subr.mxu0 0.0
    %1591 = vmatpush1.msra.mxu0 0.0
    %1592 = vmatprep.subr.mxu0 0.0
    %1593 = vmatpush1.msra.mxu0 0.0
    %1594 = vmatprep.subr.mxu0 0.0
    %1595 = vmatpush1.msra.mxu0 0.0
    %1596 = vmatprep.subr.mxu0 0.0
    %1597 = vmatpush1.msra.mxu0 0.0
    %1598 = vmatprep.subr.mxu0 0.0
    %1599 = vmatpush1.msra.mxu0 0.0
    %1600 = vmatprep.subr.mxu0 0.0
    %1601 = vmatpush1.msra.mxu0 0.0
    %1602 = vmatprep.subr.mxu0 0.0
    %1603 = vmatpush1.msra.mxu0 0.0
    %1604 = vmatprep.subr.mxu0 0.0
    %1605 = vmatpush1.msra.mxu0 0.0
    %1606 = vmatprep.subr.mxu0 0.0
    %1607 = vmatpush1.msra.mxu0 0.0
    %1608 = vmatprep.subr.mxu0 0.0
    %1609 = vmatpush1.msra.mxu0 0.0
    %1610 = vmatprep.subr.mxu0 0.0
    %1611 = vmatpush1.msra.mxu0 0.0
    %1612 = vmatprep.subr.mxu0 0.0
    %1613 = vmatpush1.msra.mxu0 0.0
    %1614 = vmatprep.subr.mxu0 0.0
    %1615 = vmatpush1.msra.mxu0 0.0
    %1616 = vmatprep.subr.mxu0 0.0
    %1617 = vmatpush1.msra.mxu0 0.0
    %1618 = vmatprep.subr.mxu0 0.0
    %1619 = vmatpush1.msra.mxu0 0.0
    %1620 = vmatprep.subr.mxu0 0.0
    %1621 = vmatpush1.msra.mxu0 0.0
    %1622 = vmatprep.subr.mxu0 0.0
    %1623 = vmatpush1.msra.mxu0 0.0
    %1624 = vmatprep.subr.mxu0 0.0
    %1625 = vmatpush1.msra.mxu0 0.0
    %1626 = vmatprep.subr.mxu0 0.0
    %1627 = vmatpush1.msra.mxu0 0.0
    %1628 = vmatprep.subr.mxu0 0.0
    %1629 = vmatpush1.msra.mxu0 0.0
    %1630 = vmatprep.subr.mxu0 0.0
    %1631 = vmatpush1.msra.mxu0 0.0
    %1632 = vmatprep.subr.mxu0 0.0
    %1633 = vmatpush1.msra.mxu0 0.0
    %1634 = vmatprep.subr.mxu0 0.0
    %1635 = vmatpush1.msra.mxu0 0.0
    %1636 = vmatprep.subr.mxu0 0.0
    %1637 = vmatpush1.msra.mxu0 0.0
    %1638 = vmatprep.subr.mxu0 0.0
    %1639 = vmatpush1.msra.mxu0 0.0
    %1640 = vmatprep.subr.mxu0 0.0
    %1641 = vmatpush1.msra.mxu0 0.0
    %1642 = vmatprep.subr.mxu0 0.0
    %1643 = vmatpush1.msra.mxu0 0.0
    %1644 = vmatprep.subr.mxu0 0.0
    %1645 = vmatpush1.msra.mxu0 0.0
    %1646 = vmatprep.mubr.f32.mxu0 0.0
    %1647 = vmatmul.mubr.f32.gmra.mrb[0].mxu0 %v1580
    %v1648 = vpop.f32.mrb[0].mxu0
    %v1649 = vadd.f32 0.0, %v1648
    %v1650 = vpop.f32.mrb[0].mxu0
    %1651 = vdwg.mxu0
    %v1652 = vadd.f32 %v1578, %v1649
    %v1653 = vadd.f32 %v1652, %v340
    %v1654 = vxor.u32 %v1653, 2147483648
    %v1655 = vmul.f32 %v1654, 1.442695
    %v1656 = vpow.pop %v1655
    %v1657 = vadd.f32 %v1656, 1.0
    %v1658 = vrcp.pop %v1657
    %v1659 = vmul.f32 1.0, %v1658
    %v1660 = vtanh.pop %v1653
    %v1661 = vmul.f32 %v1659, %v1454
    %1663 = vrot.lane.b32.xlu0 %v1660, 64
    %v1664 = vpop.permute.xlu0 %1663
    %v1666 = vmul.f32 %v1659, %v1664
    %1668 = vrot.lane.b32.xlu0 %v1666, 32
    %v1669 = vpop.permute.xlu0 %1668
    %v1671 = vadd.f32 %v1661, %v1669
    %v1672 = vtanh.pop %v1671
    %1674 = vrot.lane.b32.xlu0 %v1672, 64
    %v1675 = vpop.permute.xlu0 %1674
    %v1677 = vmul.f32 %v1659, %v1675
    %1678 = vrot.lane.b32.xlu0 %v1560, 32
    %v1679 = vpop.permute.xlu0 %1678
    %v1680 = vsel %vm95, %v1679, 0
    %1682 = vmatprep.subr.mxu0 0.0
    %1683 = vmatpush1.msra.mxu0 %v253
    %1684 = vmatprep.subr.mxu0 0.0
    %1685 = vmatpush1.msra.mxu0 %v254
    %1686 = vmatprep.subr.mxu0 0.0
    %1687 = vmatpush1.msra.mxu0 %v255
    %1688 = vmatprep.subr.mxu0 0.0
    %1689 = vmatpush1.msra.mxu0 %v256
    %1690 = vmatprep.subr.mxu0 0.0
    %1691 = vmatpush1.msra.mxu0 0.0
    %1692 = vmatprep.subr.mxu0 0.0
    %1693 = vmatpush1.msra.mxu0 0.0
    %1694 = vmatprep.subr.mxu0 0.0
    %1695 = vmatpush1.msra.mxu0 0.0
    %1696 = vmatprep.subr.mxu0 0.0
    %1697 = vmatpush1.msra.mxu0 0.0
    %1698 = vmatprep.subr.mxu0 0.0
    %1699 = vmatpush1.msra.mxu0 0.0
    %1700 = vmatprep.subr.mxu0 0.0
    %1701 = vmatpush1.msra.mxu0 0.0
    %1702 = vmatprep.subr.mxu0 0.0
    %1703 = vmatpush1.msra.mxu0 0.0
    %1704 = vmatprep.subr.mxu0 0.0
    %1705 = vmatpush1.msra.mxu0 0.0
    %1706 = vmatprep.subr.mxu0 0.0
    %1707 = vmatpush1.msra.mxu0 0.0
    %1708 = vmatprep.subr.mxu0 0.0
    %1709 = vmatpush1.msra.mxu0 0.0
    %1710 = vmatprep.subr.mxu0 0.0
    %1711 = vmatpush1.msra.mxu0 0.0
    %1712 = vmatprep.subr.mxu0 0.0
    %1713 = vmatpush1.msra.mxu0 0.0
    %1714 = vmatprep.subr.mxu0 0.0
    %1715 = vmatpush1.msra.mxu0 0.0
    %1716 = vmatprep.subr.mxu0 0.0
    %1717 = vmatpush1.msra.mxu0 0.0
    %1718 = vmatprep.subr.mxu0 0.0
    %1719 = vmatpush1.msra.mxu0 0.0
    %1720 = vmatprep.subr.mxu0 0.0
    %1721 = vmatpush1.msra.mxu0 0.0
    %1722 = vmatprep.subr.mxu0 0.0
    %1723 = vmatpush1.msra.mxu0 0.0
    %1724 = vmatprep.subr.mxu0 0.0
    %1725 = vmatpush1.msra.mxu0 0.0
    %1726 = vmatprep.subr.mxu0 0.0
    %1727 = vmatpush1.msra.mxu0 0.0
    %1728 = vmatprep.subr.mxu0 0.0
    %1729 = vmatpush1.msra.mxu0 0.0
    %1730 = vmatprep.subr.mxu0 0.0
    %1731 = vmatpush1.msra.mxu0 0.0
    %1732 = vmatprep.subr.mxu0 0.0
    %1733 = vmatpush1.msra.mxu0 0.0
    %1734 = vmatprep.subr.mxu0 0.0
    %1735 = vmatpush1.msra.mxu0 0.0
    %1736 = vmatprep.subr.mxu0 0.0
    %1737 = vmatpush1.msra.mxu0 0.0
    %1738 = vmatprep.subr.mxu0 0.0
    %1739 = vmatpush1.msra.mxu0 0.0
    %1740 = vmatprep.subr.mxu0 0.0
    %1741 = vmatpush1.msra.mxu0 0.0
    %1742 = vmatprep.subr.mxu0 0.0
    %1743 = vmatpush1.msra.mxu0 0.0
    %1744 = vmatprep.subr.mxu0 0.0
    %1745 = vmatpush1.msra.mxu0 0.0
    %1746 = vmatprep.mubr.f32.mxu0 0.0
    %1747 = vmatmul.mubr.f32.gmra.mrb[0].mxu0 %v1680
    %v1748 = vpop.f32.mrb[0].mxu0
    %v1749 = vadd.f32 0.0, %v1748
    %v1750 = vpop.f32.mrb[0].mxu0
    %1751 = vdwg.mxu0
    %v1752 = vadd.f32 %v1579, %v1749
    %v1753 = vadd.f32 %v1752, %v442
    %v1754 = vxor.u32 %v1753, 2147483648
    %v1755 = vmul.f32 %v1754, 1.442695
    %v1756 = vpow.pop %v1755
    %v1757 = vadd.f32 %v1756, 1.0
    %v1758 = vrcp.pop %v1757
    %v1759 = vmul.f32 1.0, %v1758
    %v1760 = vtanh.pop %v1753
    %v1761 = vmul.f32 %v1759, %v1554
    %1763 = vrot.lane.b32.xlu0 %v1760, 64
    %v1764 = vpop.permute.xlu0 %1763
    %v1766 = vmul.f32 %v1759, %v1764
    %1768 = vrot.lane.b32.xlu0 %v1766, 32
    %v1769 = vpop.permute.xlu0 %1768
    %v1771 = vadd.f32 %v1761, %v1769
    %v1772 = vtanh.pop %v1771
    %1774 = vrot.lane.b32.xlu0 %v1772, 64
    %v1775 = vpop.permute.xlu0 %1774
    %v1777 = vmul.f32 %v1759, %v1775
    %1779 = vrot.lane.b32.xlu0 %v1677, 32
    %v1780 = vpop.permute.xlu0 %1779
    %1783 = vrot.lane.b32.xlu0 %v1777, 96
    %v1784 = vpop.permute.xlu0 %1783
    %1787 = vrot.lane.b32.xlu0 %v1771, 64
    %v1788 = vpop.permute.xlu0 %1787
    %v1790 = vsel %vm95, %v1780, %v1671
    %v1791 = vsel %vm482, %v1790, %v1784
    %v1792 = vsel %vm484, %v1791, %v1788
    %s1793 = scalar_lea.vmem [#allocation11], 48
    %1794 = vst [vmem:[%s1793] sm:$0xff] %v1792
    %v1795 = vld [vmem:[%s260] sm:$0xff]
    %v1796 = vld [vmem:[#allocation2 + $0x8] sm:$0xff]
    %v1797 = vsel %vm95, %v1780, 0
    %1799 = vmatprep.subr.mxu0 0.0
    %1800 = vmatpush1.msra.mxu0 %v249
    %1801 = vmatprep.subr.mxu0 0.0
    %1802 = vmatpush1.msra.mxu0 %v250
    %1803 = vmatprep.subr.mxu0 0.0
    %1804 = vmatpush1.msra.mxu0 %v251
    %1805 = vmatprep.subr.mxu0 0.0
    %1806 = vmatpush1.msra.mxu0 %v252
    %1807 = vmatprep.subr.mxu0 0.0
    %1808 = vmatpush1.msra.mxu0 0.0
    %1809 = vmatprep.subr.mxu0 0.0
    %1810 = vmatpush1.msra.mxu0 0.0
    %1811 = vmatprep.subr.mxu0 0.0
    %1812 = vmatpush1.msra.mxu0 0.0
    %1813 = vmatprep.subr.mxu0 0.0
    %1814 = vmatpush1.msra.mxu0 0.0
    %1815 = vmatprep.subr.mxu0 0.0
    %1816 = vmatpush1.msra.mxu0 0.0
    %1817 = vmatprep.subr.mxu0 0.0
    %1818 = vmatpush1.msra.mxu0 0.0
    %1819 = vmatprep.subr.mxu0 0.0
    %1820 = vmatpush1.msra.mxu0 0.0
    %1821 = vmatprep.subr.mxu0 0.0
    %1822 = vmatpush1.msra.mxu0 0.0
    %1823 = vmatprep.subr.mxu0 0.0
    %1824 = vmatpush1.msra.mxu0 0.0
    %1825 = vmatprep.subr.mxu0 0.0
    %1826 = vmatpush1.msra.mxu0 0.0
    %1827 = vmatprep.subr.mxu0 0.0
    %1828 = vmatpush1.msra.mxu0 0.0
    %1829 = vmatprep.subr.mxu0 0.0
    %1830 = vmatpush1.msra.mxu0 0.0
    %1831 = vmatprep.subr.mxu0 0.0
    %1832 = vmatpush1.msra.mxu0 0.0
    %1833 = vmatprep.subr.mxu0 0.0
    %1834 = vmatpush1.msra.mxu0 0.0
    %1835 = vmatprep.subr.mxu0 0.0
    %1836 = vmatpush1.msra.mxu0 0.0
    %1837 = vmatprep.subr.mxu0 0.0
    %1838 = vmatpush1.msra.mxu0 0.0
    %1839 = vmatprep.subr.mxu0 0.0
    %1840 = vmatpush1.msra.mxu0 0.0
    %1841 = vmatprep.subr.mxu0 0.0
    %1842 = vmatpush1.msra.mxu0 0.0
    %1843 = vmatprep.subr.mxu0 0.0
    %1844 = vmatpush1.msra.mxu0 0.0
    %1845 = vmatprep.subr.mxu0 0.0
    %1846 = vmatpush1.msra.mxu0 0.0
    %1847 = vmatprep.subr.mxu0 0.0
    %1848 = vmatpush1.msra.mxu0 0.0
    %1849 = vmatprep.subr.mxu0 0.0
    %1850 = vmatpush1.msra.mxu0 0.0
    %1851 = vmatprep.subr.mxu0 0.0
    %1852 = vmatpush1.msra.mxu0 0.0
    %1853 = vmatprep.subr.mxu0 0.0
    %1854 = vmatpush1.msra.mxu0 0.0
    %1855 = vmatprep.subr.mxu0 0.0
    %1856 = vmatpush1.msra.mxu0 0.0
    %1857 = vmatprep.subr.mxu0 0.0
    %1858 = vmatpush1.msra.mxu0 0.0
    %1859 = vmatprep.subr.mxu0 0.0
    %1860 = vmatpush1.msra.mxu0 0.0
    %1861 = vmatprep.subr.mxu0 0.0
    %1862 = vmatpush1.msra.mxu0 0.0
    %1863 = vmatprep.mubr.f32.mxu0 0.0
    %1864 = vmatmul.mubr.f32.gmra.mrb[0].mxu0 %v1797
    %v1865 = vpop.f32.mrb[0].mxu0
    %v1866 = vadd.f32 0.0, %v1865
    %v1867 = vpop.f32.mrb[0].mxu0
    %1868 = vdwg.mxu0
    %v1869 = vadd.f32 %v1795, %v1866
    %v1870 = vadd.f32 %v1869, %v340
    %v1871 = vxor.u32 %v1870, 2147483648
    %v1872 = vmul.f32 %v1871, 1.442695
    %v1873 = vpow.pop %v1872
    %v1874 = vadd.f32 %v1873, 1.0
    %v1875 = vrcp.pop %v1874
    %v1876 = vmul.f32 1.0, %v1875
    %v1877 = vtanh.pop %v1870
    %v1878 = vmul.f32 %v1876, %v1671
    %1880 = vrot.lane.b32.xlu0 %v1877, 64
    %v1881 = vpop.permute.xlu0 %1880
    %v1883 = vmul.f32 %v1876, %v1881
    %1885 = vrot.lane.b32.xlu0 %v1883, 32
    %v1886 = vpop.permute.xlu0 %1885
    %v1888 = vadd.f32 %v1878, %v1886
    %v1889 = vtanh.pop %v1888
    %1891 = vrot.lane.b32.xlu0 %v1889, 64
    %v1892 = vpop.permute.xlu0 %1891
    %v1894 = vmul.f32 %v1876, %v1892
    %1895 = vrot.lane.b32.xlu0 %v1777, 32
    %v1896 = vpop.permute.xlu0 %1895
    %v1897 = vsel %vm95, %v1896, 0
    %1899 = vmatprep.subr.mxu0 0.0
    %1900 = vmatpush1.msra.mxu0 %v253
    %1901 = vmatprep.subr.mxu0 0.0
    %1902 = vmatpush1.msra.mxu0 %v254
    %1903 = vmatprep.subr.mxu0 0.0
    %1904 = vmatpush1.msra.mxu0 %v255
    %1905 = vmatprep.subr.mxu0 0.0
    %1906 = vmatpush1.msra.mxu0 %v256
    %1907 = vmatprep.subr.mxu0 0.0
    %1908 = vmatpush1.msra.mxu0 0.0
    %1909 = vmatprep.subr.mxu0 0.0
    %1910 = vmatpush1.msra.mxu0 0.0
    %1911 = vmatprep.subr.mxu0 0.0
    %1912 = vmatpush1.msra.mxu0 0.0
    %1913 = vmatprep.subr.mxu0 0.0
    %1914 = vmatpush1.msra.mxu0 0.0
    %1915 = vmatprep.subr.mxu0 0.0
    %1916 = vmatpush1.msra.mxu0 0.0
    %1917 = vmatprep.subr.mxu0 0.0
    %1918 = vmatpush1.msra.mxu0 0.0
    %1919 = vmatprep.subr.mxu0 0.0
    %1920 = vmatpush1.msra.mxu0 0.0
    %1921 = vmatprep.subr.mxu0 0.0
    %1922 = vmatpush1.msra.mxu0 0.0
    %1923 = vmatprep.subr.mxu0 0.0
    %1924 = vmatpush1.msra.mxu0 0.0
    %1925 = vmatprep.subr.mxu0 0.0
    %1926 = vmatpush1.msra.mxu0 0.0
    %1927 = vmatprep.subr.mxu0 0.0
    %1928 = vmatpush1.msra.mxu0 0.0
    %1929 = vmatprep.subr.mxu0 0.0
    %1930 = vmatpush1.msra.mxu0 0.0
    %1931 = vmatprep.subr.mxu0 0.0
    %1932 = vmatpush1.msra.mxu0 0.0
    %1933 = vmatprep.subr.mxu0 0.0
    %1934 = vmatpush1.msra.mxu0 0.0
    %1935 = vmatprep.subr.mxu0 0.0
    %1936 = vmatpush1.msra.mxu0 0.0
    %1937 = vmatprep.subr.mxu0 0.0
    %1938 = vmatpush1.msra.mxu0 0.0
    %1939 = vmatprep.subr.mxu0 0.0
    %1940 = vmatpush1.msra.mxu0 0.0
    %1941 = vmatprep.subr.mxu0 0.0
    %1942 = vmatpush1.msra.mxu0 0.0
    %1943 = vmatprep.subr.mxu0 0.0
    %1944 = vmatpush1.msra.mxu0 0.0
    %1945 = vmatprep.subr.mxu0 0.0
    %1946 = vmatpush1.msra.mxu0 0.0
    %1947 = vmatprep.subr.mxu0 0.0
    %1948 = vmatpush1.msra.mxu0 0.0
    %1949 = vmatprep.subr.mxu0 0.0
    %1950 = vmatpush1.msra.mxu0 0.0
    %1951 = vmatprep.subr.mxu0 0.0
    %1952 = vmatpush1.msra.mxu0 0.0
    %1953 = vmatprep.subr.mxu0 0.0
    %1954 = vmatpush1.msra.mxu0 0.0
    %1955 = vmatprep.subr.mxu0 0.0
    %1956 = vmatpush1.msra.mxu0 0.0
    %1957 = vmatprep.subr.mxu0 0.0
    %1958 = vmatpush1.msra.mxu0 0.0
    %1959 = vmatprep.subr.mxu0 0.0
    %1960 = vmatpush1.msra.mxu0 0.0
    %1961 = vmatprep.subr.mxu0 0.0
    %1962 = vmatpush1.msra.mxu0 0.0
    %1963 = vmatprep.mubr.f32.mxu0 0.0
    %1964 = vmatmul.mubr.f32.gmra.mrb[0].mxu0 %v1897
    %v1965 = vpop.f32.mrb[0].mxu0
    %v1966 = vadd.f32 0.0, %v1965
    %v1967 = vpop.f32.mrb[0].mxu0
    %1968 = vdwg.mxu0
    %v1969 = vadd.f32 %v1796, %v1966
    %v1970 = vadd.f32 %v1969, %v442
    %v1971 = vxor.u32 %v1970, 2147483648
    %v1972 = vmul.f32 %v1971, 1.442695
    %v1973 = vpow.pop %v1972
    %v1974 = vadd.f32 %v1973, 1.0
    %v1975 = vrcp.pop %v1974
    %v1976 = vmul.f32 1.0, %v1975
    %v1977 = vtanh.pop %v1970
    %v1978 = vmul.f32 %v1976, %v1771
    %1980 = vrot.lane.b32.xlu0 %v1977, 64
    %v1981 = vpop.permute.xlu0 %1980
    %v1983 = vmul.f32 %v1976, %v1981
    %1985 = vrot.lane.b32.xlu0 %v1983, 32
    %v1986 = vpop.permute.xlu0 %1985
    %v1988 = vadd.f32 %v1978, %v1986
    %v1989 = vtanh.pop %v1988
    %1991 = vrot.lane.b32.xlu0 %v1989, 64
    %v1992 = vpop.permute.xlu0 %1991
    %v1994 = vmul.f32 %v1976, %v1992
    %1996 = vrot.lane.b32.xlu0 %v1894, 32
    %v1997 = vpop.permute.xlu0 %1996
    %2000 = vrot.lane.b32.xlu0 %v1994, 96
    %v2001 = vpop.permute.xlu0 %2000
    %2004 = vrot.lane.b32.xlu0 %v1988, 64
    %v2005 = vpop.permute.xlu0 %2004
    %v2007 = vsel %vm95, %v1997, %v1888
    %v2008 = vsel %vm482, %v2007, %v2001
    %v2009 = vsel %vm484, %v2008, %v2005
    %s2010 = scalar_lea.vmem [#allocation11], 56
    %2011 = vst [vmem:[%s2010] sm:$0xff] %v2009
    // Predicated region
    $region42: #{tpu_custom_call.1} parent=1 // pred_check
      _
    $region43: #{tpu_custom_call.1} parent=1 // pred_check_branch
      %2013 = sbr.rel (0) target = $region45
    $region44: #{tpu_custom_call.1} parent=1 // pred_region
      %s2015 = ssub.s32 1024, 1024
      %2016 = vsyncadd [#allocation5], %s2015
      %s2017 = sshll.u32 [#allocation11], 4
      %s2018 = int_to_ptr.vmem [resolvable:$true] %s2017
      %2023 = dma.vmem_to_hbm [thread:$0]  %s2018, 1024, %s6, [#allocation5], 128, 128, 8
    $region45: #{tpu_custom_call.1} parent=1 // pred_fallthru
      _
    // Predicated region
    $region46: #{tpu_custom_call.1} parent=1 // pred_check
      _
    $region47: #{tpu_custom_call.1} parent=1 // pred_check_branch
      %2025 = sbr.rel (0) target = $region49
    $region48: #{tpu_custom_call.1} parent=1 // pred_region
      %2026 = dma.done [#allocation5], 1024
    $region49: #{tpu_custom_call.1} parent=1 // pred_fallthru
      _
    %2027 = vsyncpa [#allocation4], 1
    %2028 = vsyncpa [#allocation7], 1
    %2029 = vsyncpa [#allocation10], 1
    %2030 = vsyncpa [#allocation5], 1

</llo_original>
